<compile_context>
chip_gen: v6e
topology: v6e:2x2x1
jax: 0.10.0
libtpu: 0.0.40
codegen_flags: <defaults>
</compile_context>

<pallas_src>
import functools
import math

import jax
import jax.numpy as jnp
from jax.experimental import pallas as pl
from jax.experimental.pallas import tpu as pltpu


def _nbytes(a):
    return math.prod(a.shape) * jnp.dtype(a.dtype).itemsize


# ----------------------------------------------------------------------------
# Fused kernel: all GCN layers of every graph type + the full MLP head.
# ----------------------------------------------------------------------------
def _fused_tabgnn_kernel(a_ref, x_ref, *refs, num_gnn_layers, num_rest,
                         num_graph_types):
    """Grid = (G,).  refs layout:
       [gnn_w_0, gnn_b_0, ..., gnn_w_{L-1}, gnn_b_{L-1},
        w0x, w0g, b0,
        wr_0, br_0, ..., wr_{R-1}, br_{R-1},
        o_ref, acc_ref]
    a_ref: (1, N, N) f32   x_ref: (N, Fin) f32
    gnn_w_l: (1, K_l, O_l) gnn_b_l: (1, 1, O_l)
    w0x: (Fin, H0)  w0g: (1, Fout, H0)  b0: (1, H0)
    wr_r: (K_r, O_r) / last one pre-transposed to (1, K_last); br_r: (1, O_r)
    o_ref: (N, 1) f32      acc_ref: VMEM (N, H0) f32 scratch
    """
    L, R, G = num_gnn_layers, num_rest, num_graph_types
    gnn_refs = refs[:2 * L]
    w0x_ref = refs[2 * L]
    w0g_ref = refs[2 * L + 1]
    b0_ref = refs[2 * L + 2]
    mlp_refs = refs[2 * L + 3:2 * L + 3 + 2 * R]
    o_ref = refs[2 * L + 3 + 2 * R]
    acc_ref = refs[2 * L + 3 + 2 * R + 1]

    g = pl.program_id(0)
    a = a_ref[0]               # [N, N] f32, loaded once, resident for every layer
    x = x_ref[...]             # [N, Fin] f32, resident across grid steps

    # --- GCN stack for graph type g ---
    h = x
    for li in range(L):
        w = gnn_refs[2 * li][0]          # [K_l, O_l]
        b = gnn_refs[2 * li + 1][0]      # [1, O_l]
        xw = jnp.dot(h, w, preferred_element_type=jnp.float32)
        out = jnp.dot(a, xw, preferred_element_type=jnp.float32) + b
        if li < L - 1:
            out = jnp.maximum(out, 0.0)  # ReLU; dropout p=0 / eval -> identity
        h = out
    emb = h                              # [N, Fout]

    # --- MLP layer 0 with the concat folded into per-segment W0 blocks ---
    @pl.when(g == 0)
    def _():
        acc_ref[...] = (jnp.dot(x, w0x_ref[...],
                                preferred_element_type=jnp.float32) + b0_ref[...])

    acc_ref[...] += jnp.dot(emb, w0g_ref[0], preferred_element_type=jnp.float32)

    # --- last graph type: run the remaining MLP layers, store only [N, 1] ---
    @pl.when(g == G - 1)
    def _():
        hm = jnp.maximum(acc_ref[...], 0.0)              # ReLU after Linear0
        for r in range(R - 1):
            wr = mlp_refs[2 * r][...]                    # [K_r, O_r]
            br = mlp_refs[2 * r + 1][...]                # [1, O_r]
            hm = jnp.maximum(
                jnp.dot(hm, wr, preferred_element_type=jnp.float32) + br, 0.0)
        # Final Linear(., 1): lane-reduce instead of a 1-lane-wide MXU matmul,
        # and store only the meaningful [N, 1] column (no [N, 128] slab).
        w_last = mlp_refs[2 * (R - 1)][...]              # [1, K_last] (row)
        b_last = mlp_refs[2 * (R - 1) + 1][...]          # [1, 1]
        o_ref[...] = jnp.sum(hm * w_last, axis=1, keepdims=True) + b_last


# ----------------------------------------------------------------------------
# pallas_call wrapper (one fused call for the whole forward pass)
# ----------------------------------------------------------------------------
def tabgnn_forward(a_hats, x, gnn_w, gnn_b, w0x, w0g, b0, mlp_rest):
    """a_hats: [G, N, N] f32;  x: [N, Fin] f32;
    gnn_w/gnn_b: per-layer lists of [G, K_l, O_l] / [G, 1, O_l];
    w0x: [Fin, H0]; w0g: [G, Fout, H0]; b0: [1, H0];
    mlp_rest: list of (w, b), last weight pre-transposed to [1, K]."""
    G, N, _ = a_hats.shape
    Fin = x.shape[1]
    L = len(gnn_w)
    R = len(mlp_rest)
    H0 = w0x.shape[1]
    Fout = w0g.shape[1]

    operands = [a_hats, x]
    in_specs = [
        pl.BlockSpec((1, N, N), lambda g: (g, 0, 0)),    # A_hat per graph type
        pl.BlockSpec((N, Fin), lambda g: (0, 0)),        # x resident
    ]
    for wl, bl in zip(gnn_w, gnn_b):
        in_specs.append(pl.BlockSpec((1,) + wl.shape[1:], lambda g: (g, 0, 0)))
        in_specs.append(pl.BlockSpec((1,) + bl.shape[1:], lambda g: (g, 0, 0)))
        operands += [wl, bl]
    in_specs += [
        pl.BlockSpec(w0x.shape, lambda g: (0, 0)),
        pl.BlockSpec((1,) + w0g.shape[1:], lambda g: (g, 0, 0)),
        pl.BlockSpec(b0.shape, lambda g: (0, 0)),
    ]
    operands += [w0x, w0g, b0]
    for wr, br in mlp_rest:
        in_specs.append(pl.BlockSpec(wr.shape, lambda g: (0, 0)))
        in_specs.append(pl.BlockSpec(br.shape, lambda g: (0, 0)))
        operands += [wr, br]

    # Advisory cost estimate so XLA can overlap the call with surrounding ops.
    flops = 0
    for wl in gnn_w:
        k, o = wl.shape[1], wl.shape[2]
        flops += G * (2 * N * k * o + 2 * N * N * o)
    flops += 2 * N * Fin * H0 + G * 2 * N * Fout * H0
    for r, (wr, _) in enumerate(mlp_rest):
        flops += 2 * N * wr.shape[0] * wr.shape[1] if r < R - 1 else 2 * N * wr.shape[1]
    bytes_accessed = sum(_nbytes(op) for op in operands) + N * 4

    # Explicit VMEM budget (v7x: 64 MiB physical / 32 MiB scoped default).
    per_g = (_nbytes(a_hats) // G + _nbytes(w0g) // G
             + sum((_nbytes(w) + _nbytes(b)) // G for w, b in zip(gnn_w, gnn_b)))
    resident = (_nbytes(x) + _nbytes(w0x) + _nbytes(b0)
                + sum(_nbytes(w) + _nbytes(b) for w, b in mlp_rest)
                + N * H0 * 4 + N * 4)
    vmem_needed = 2 * per_g + resident               # per-g blocks double-buffered
    vmem_limit = int(min(96 * 2**20, max(32 * 2**20, 2 * vmem_needed)))

    return pl.pallas_call(
        functools.partial(_fused_tabgnn_kernel, num_gnn_layers=L, num_rest=R,
                          num_graph_types=G),
        out_shape=jax.ShapeDtypeStruct((N, 1), jnp.float32),
        grid_spec=pltpu.PrefetchScalarGridSpec(
            num_scalar_prefetch=0,
            grid=(G,),
            in_specs=in_specs,
            out_specs=pl.BlockSpec((N, 1), lambda g: (0, 0)),
            scratch_shapes=[pltpu.VMEM((N, H0), jnp.float32)],
        ),
        compiler_params=pltpu.CompilerParams(
            dimension_semantics=("arbitrary",),   # g carries the MLP accumulator
            vmem_limit_bytes=vmem_limit),
        cost_estimate=pl.CostEstimate(flops=int(flops), transcendentals=0,
                                      bytes_accessed=int(bytes_accessed)),
    )(*operands)
    # TODO(synk): for large N where A_hat [N, N] no longer fits VMEM (~2.9k on
    # v7x, ~5.7k on v5e/v6e), add a leading node-row-tile grid axis marked
    # "parallel" (tile A by rows, keep x/weights resident); that also recovers
    # 2-TensorCore parallelism on v7x since the g axis is "arbitrary" here.


# ----------------------------------------------------------------------------
# Plain-JAX glue: adjacency normalization, parameter init & packing, reference
# ----------------------------------------------------------------------------
def normalized_adjacency(edge_index, num_nodes):
    """Dense GCN normalization D^{-1/2}(A + I_remaining)D^{-1/2} (PyG gcn_norm).
    Duplicate edges accumulate (scatter-add); self loops are added only for
    nodes that do not already have one (add_remaining_self_loops semantics)."""
    src, dst = edge_index[0], edge_index[1]
    adj = jnp.zeros((num_nodes, num_nodes), jnp.float32).at[dst, src].add(1.0)
    diag = jnp.diagonal(adj)
    adj = adj + jnp.diag(jnp.where(diag > 0, 0.0, 1.0))
    deg = adj.sum(axis=1)
    dinv = jnp.where(deg > 0, jax.lax.rsqrt(deg), 0.0)
    return dinv[:, None] * adj * dinv[None, :]


def init_tabgnn_params(key, in_channels, hidden_channels, gnn_out_channels,
                       mlp_hidden_channels, num_layers, num_graph_types):
    """Deterministic synthetic parameters. Weights stored as [Fin, Fout]."""
    params = {"gnn": [], "mlp": []}
    scale = 0.1

    def nxt():
        nonlocal key
        key, sub = jax.random.split(key)
        return sub

    dims = ([in_channels, hidden_channels]
            + [hidden_channels] * (num_layers - 2) + [gnn_out_channels])
    for _ in range(num_graph_types):
        layers = []
        for li in range(len(dims) - 1):
            fi, fo = dims[li], dims[li + 1]
            w = scale * jax.random.normal(nxt(), (fi, fo), jnp.float32)
            b = scale * jax.random.normal(nxt(), (1, fo), jnp.float32)
            layers.append((w, b))
        params["gnn"].append(layers)

    mlp_dims = ([in_channels + gnn_out_channels * num_graph_types]
                + list(mlp_hidden_channels) + [1])
    for li in range(len(mlp_dims) - 1):
        fi, fo = mlp_dims[li], mlp_dims[li + 1]
        w = scale * jax.random.normal(nxt(), (fi, fo), jnp.float32)
        b = scale * jax.random.normal(nxt(), (1, fo), jnp.float32)
        params["mlp"].append((w, b))
    return params


def pack_params(params, in_channels, gnn_out_channels, num_graph_types):
    """Stack per-graph-type GNN layers, split W0 along the concat axis, and
    pre-transpose the final [K, 1] weight to a [1, K] row.  No 128-lane padding
    of contraction dims (natural widths go straight to the kernel)."""
    G = num_graph_types
    L = len(params["gnn"][0])
    gnn_w = [jnp.stack([params["gnn"][g][li][0] for g in range(G)]) for li in range(L)]
    gnn_b = [jnp.stack([params["gnn"][g][li][1] for g in range(G)]) for li in range(L)]

    w0, b0 = params["mlp"][0]
    w0x = w0[:in_channels]                                        # [Fin, H0]
    w0g = jnp.stack([w0[in_channels + g * gnn_out_channels:
                        in_channels + (g + 1) * gnn_out_channels]
                     for g in range(G)])                          # [G, Fout, H0]

    mlp_rest = []
    rest = params["mlp"][1:]
    for r, (w, b) in enumerate(rest):
        if r == len(rest) - 1:
            mlp_rest.append((w.T, b))     # final [K, 1] -> [1, K] row
        else:
            mlp_rest.append((w, b))
    return gnn_w, gnn_b, w0x, w0g, b0, mlp_rest


def reference_forward(params, x, a_hats):
    """Pure-JAX reference matching the PyTorch module (eval mode)."""
    embs = []
    for g, layers in enumerate(params["gnn"]):
        h = x
        for li, (w, b) in enumerate(layers):
            h = a_hats[g] @ (h @ w) + b
            if li < len(layers) - 1:
                h = jnp.maximum(h, 0.0)
        embs.append(h)
    h = jnp.concatenate([x] + embs, axis=1)
    for li, (w, b) in enumerate(params["mlp"]):
        h = h @ w + b
        if li < len(params["mlp"]) - 1:
            h = jnp.maximum(h, 0.0)
    return h


# ----------------------------------------------------------------------------
# Demo
# ----------------------------------------------------------------------------
if __name__ == "__main__":
    key = jax.random.PRNGKey(0)

    # Model config (small, consistent with the module)
    N = 32                       # nodes (multiple of 8 -> sublane aligned)
    in_channels = 16
    hidden_channels = 32
    gnn_out_channels = 16
    mlp_hidden_channels = [32, 16]
    num_layers = 2
    num_graph_types = 2

    key, kx, ke1, ke2, kp = jax.random.split(key, 5)
    x = jax.random.normal(kx, (N, in_channels), jnp.float32)

    # Two synthetic graph types: deterministic random edge lists + a ring.
    def make_edges(k, n_edges):
        src = jax.random.randint(k, (n_edges,), 0, N)
        dst = jnp.roll(src, 3)
        ring = jnp.arange(N)
        return jnp.stack([jnp.concatenate([src, ring]),
                          jnp.concatenate([dst, (ring + 1) % N])], axis=0)

    edge_indices = [make_edges(ke1, 48), make_edges(ke2, 48)]
    a_hats = jnp.stack([normalized_adjacency(ei, N) for ei in edge_indices])  # [G,N,N]

    params = init_tabgnn_params(kp, in_channels, hidden_channels, gnn_out_channels,
                                mlp_hidden_channels, num_layers, num_graph_types)
    gnn_w, gnn_b, w0x, w0g, b0, mlp_rest = pack_params(
        params, in_channels, gnn_out_channels, num_graph_types)

    fwd = jax.jit(tabgnn_forward)
    out = jax.block_until_ready(
        fwd(a_hats, x, gnn_w, gnn_b, w0x, w0g, b0, mlp_rest))

    assert out.shape == (N, 1), out.shape
    assert bool(jnp.all(jnp.isfinite(out)))

    # Sanity check against the plain-JAX reference (all f32, loose tol for
    # TPU matmul pass differences).
    ref = reference_forward(params, x, a_hats)
    max_err = float(jnp.max(jnp.abs(out - ref)))
    assert max_err < 5e-2, f"mismatch vs reference: {max_err}"

    # TODO(synk): training-mode dropout is not implemented (p=0.0 / eval mode).
    print("KERNEL_OK")
</pallas_src>

<mosaic_0001>
module attributes {stable_mosaic.version = 11 : i64} {
  func.func @_fused_tabgnn_kernel(%arg0: i32, %arg1: memref<1x32x32xf32, #tpu.memory_space<vmem>>, %arg2: memref<32x16xf32, #tpu.memory_space<vmem>>, %arg3: memref<1x16x32xf32, #tpu.memory_space<vmem>>, %arg4: memref<1x1x32xf32, #tpu.memory_space<vmem>>, %arg5: memref<1x32x16xf32, #tpu.memory_space<vmem>>, %arg6: memref<1x1x16xf32, #tpu.memory_space<vmem>>, %arg7: memref<16x32xf32, #tpu.memory_space<vmem>>, %arg8: memref<1x16x32xf32, #tpu.memory_space<vmem>>, %arg9: memref<1x32xf32, #tpu.memory_space<vmem>>, %arg10: memref<32x16xf32, #tpu.memory_space<vmem>>, %arg11: memref<1x16xf32, #tpu.memory_space<vmem>>, %arg12: memref<1x16xf32, #tpu.memory_space<vmem>>, %arg13: memref<1x1xf32, #tpu.memory_space<vmem>>, %arg14: memref<32x1xf32, #tpu.memory_space<vmem>>, %arg15: memref<32x32xf32, #tpu.memory_space<vmem>>) attributes {dimension_semantics = [#tpu.dimension_semantics<arbitrary>], iteration_bounds = array<i64: 2>, scalar_prefetch = 0 : i64, scratch_operands = 1 : i64, tpu.core_type = #tpu.core_type<tc>, window_params = [{transform_indices = @transform_0, window_bounds = array<i64: 1, 32, 32>}, {pipeline_mode = #tpu.pipeline_mode<synchronous>, transform_indices = @transform_1, window_bounds = array<i64: 32, 16>}, {transform_indices = @transform_2, window_bounds = array<i64: 1, 16, 32>}, {transform_indices = @transform_3, window_bounds = array<i64: 1, 1, 32>}, {transform_indices = @transform_4, window_bounds = array<i64: 1, 32, 16>}, {transform_indices = @transform_5, window_bounds = array<i64: 1, 1, 16>}, {pipeline_mode = #tpu.pipeline_mode<synchronous>, transform_indices = @transform_6, window_bounds = array<i64: 16, 32>}, {transform_indices = @transform_7, window_bounds = array<i64: 1, 16, 32>}, {pipeline_mode = #tpu.pipeline_mode<synchronous>, transform_indices = @transform_8, window_bounds = array<i64: 1, 32>}, {pipeline_mode = #tpu.pipeline_mode<synchronous>, transform_indices = @transform_9, window_bounds = array<i64: 32, 16>}, {pipeline_mode = #tpu.pipeline_mode<synchronous>, transform_indices = @transform_10, window_bounds = array<i64: 1, 16>}, {pipeline_mode = #tpu.pipeline_mode<synchronous>, transform_indices = @transform_11, window_bounds = array<i64: 1, 16>}, {pipeline_mode = #tpu.pipeline_mode<synchronous>, transform_indices = @transform_12, window_bounds = array<i64: 1, 1>}, {pipeline_mode = #tpu.pipeline_mode<synchronous>, transform_indices = @transform_13, window_bounds = array<i64: 32, 1>}]} {
    %c0 = arith.constant 0 : index
    %c0_0 = arith.constant 0 : index
    %c0_1 = arith.constant 0 : index
    %0 = vector.load %arg1[%c0, %c0_0, %c0_1] : memref<1x32x32xf32, #tpu.memory_space<vmem>>, vector<1x32x32xf32>
    %1 = vector.shape_cast %0 : vector<1x32x32xf32> to vector<32x32xf32>
    %c0_2 = arith.constant 0 : index
    %c0_3 = arith.constant 0 : index
    %2 = vector.load %arg2[%c0_2, %c0_3] : memref<32x16xf32, #tpu.memory_space<vmem>>, vector<32x16xf32>
    %c0_4 = arith.constant 0 : index
    %c0_5 = arith.constant 0 : index
    %c0_6 = arith.constant 0 : index
    %3 = vector.load %arg3[%c0_4, %c0_5, %c0_6] : memref<1x16x32xf32, #tpu.memory_space<vmem>>, vector<1x16x32xf32>
    %4 = vector.shape_cast %3 : vector<1x16x32xf32> to vector<16x32xf32>
    %c0_7 = arith.constant 0 : index
    %c0_8 = arith.constant 0 : index
    %c0_9 = arith.constant 0 : index
    %5 = vector.load %arg4[%c0_7, %c0_8, %c0_9] : memref<1x1x32xf32, #tpu.memory_space<vmem>>, vector<1x1x32xf32>
    %6 = vector.shape_cast %5 : vector<1x1x32xf32> to vector<1x32xf32>
    %cst = arith.constant dense<0.000000e+00> : vector<32x32xf32>
    %7 = tpu.matmul %2, %4, %cst {dimension_numbers = #tpu.dot_dimension_numbers<[1], [0], [0], [1], [0, 0, 1, 1], [], []>} : vector<32x16xf32>, vector<16x32xf32>, vector<32x32xf32> -> vector<32x32xf32>
    %cst_10 = arith.constant dense<0.000000e+00> : vector<32x32xf32>
    %8 = tpu.matmul %1, %7, %cst_10 {dimension_numbers = #tpu.dot_dimension_numbers<[1], [0], [0], [1], [0, 0, 1, 1], [], []>} : vector<32x32xf32>, vector<32x32xf32>, vector<32x32xf32> -> vector<32x32xf32>
    %9 = vector.broadcast %6 : vector<1x32xf32> to vector<32x32xf32>
    %10 = arith.addf %8, %9 : vector<32x32xf32>
    %cst_11 = arith.constant 0.000000e+00 : f32
    %11 = vector.broadcast %cst_11 : f32 to vector<32x32xf32>
    %12 = arith.maximumf %10, %11 : vector<32x32xf32>
    %c0_12 = arith.constant 0 : index
    %c0_13 = arith.constant 0 : index
    %c0_14 = arith.constant 0 : index
    %13 = vector.load %arg5[%c0_12, %c0_13, %c0_14] : memref<1x32x16xf32, #tpu.memory_space<vmem>>, vector<1x32x16xf32>
    %14 = vector.shape_cast %13 : vector<1x32x16xf32> to vector<32x16xf32>
    %c0_15 = arith.constant 0 : index
    %c0_16 = arith.constant 0 : index
    %c0_17 = arith.constant 0 : index
    %15 = vector.load %arg6[%c0_15, %c0_16, %c0_17] : memref<1x1x16xf32, #tpu.memory_space<vmem>>, vector<1x1x16xf32>
    %16 = vector.shape_cast %15 : vector<1x1x16xf32> to vector<1x16xf32>
    %cst_18 = arith.constant dense<0.000000e+00> : vector<32x16xf32>
    %17 = tpu.matmul %12, %14, %cst_18 {dimension_numbers = #tpu.dot_dimension_numbers<[1], [0], [0], [1], [0, 0, 1, 1], [], []>} : vector<32x32xf32>, vector<32x16xf32>, vector<32x16xf32> -> vector<32x16xf32>
    %cst_19 = arith.constant dense<0.000000e+00> : vector<32x16xf32>
    %18 = tpu.matmul %1, %17, %cst_19 {dimension_numbers = #tpu.dot_dimension_numbers<[1], [0], [0], [1], [0, 0, 1, 1], [], []>} : vector<32x32xf32>, vector<32x16xf32>, vector<32x16xf32> -> vector<32x16xf32>
    %19 = vector.broadcast %16 : vector<1x16xf32> to vector<32x16xf32>
    %20 = arith.addf %18, %19 : vector<32x16xf32>
    %c0_i32 = arith.constant 0 : i32
    %21 = arith.cmpi eq, %arg0, %c0_i32 : i32
    %22 = arith.extui %21 : i1 to i32
    %c0_i32_20 = arith.constant 0 : i32
    %23 = arith.cmpi ne, %22, %c0_i32_20 : i32
    scf.if %23 {
      %c0_30 = arith.constant 0 : index
      %c0_31 = arith.constant 0 : index
      %33 = vector.load %arg7[%c0_30, %c0_31] : memref<16x32xf32, #tpu.memory_space<vmem>>, vector<16x32xf32>
      %cst_32 = arith.constant dense<0.000000e+00> : vector<32x32xf32>
      %34 = tpu.matmul %2, %33, %cst_32 {dimension_numbers = #tpu.dot_dimension_numbers<[1], [0], [0], [1], [0, 0, 1, 1], [], []>} : vector<32x16xf32>, vector<16x32xf32>, vector<32x32xf32> -> vector<32x32xf32>
      %c0_33 = arith.constant 0 : index
      %c0_34 = arith.constant 0 : index
      %35 = vector.load %arg9[%c0_33, %c0_34] : memref<1x32xf32, #tpu.memory_space<vmem>>, vector<1x32xf32>
      %36 = vector.broadcast %35 : vector<1x32xf32> to vector<32x32xf32>
      %37 = arith.addf %34, %36 : vector<32x32xf32>
      %c0_35 = arith.constant 0 : index
      %c0_36 = arith.constant 0 : index
      %38 = vector.load %arg15[%c0_35, %c0_36] : memref<32x32xf32, #tpu.memory_space<vmem>>, vector<32x32xf32>
      tpu.vector_store %arg15[%c0_35, %c0_36], %37 {strides = array<i32>} : memref<32x32xf32, #tpu.memory_space<vmem>>, vector<32x32xf32>,
    } else {
    }
    %c0_21 = arith.constant 0 : index
    %c0_22 = arith.constant 0 : index
    %24 = vector.load %arg15[%c0_21, %c0_22] : memref<32x32xf32, #tpu.memory_space<vmem>>, vector<32x32xf32>
    %c0_23 = arith.constant 0 : index
    %c0_24 = arith.constant 0 : index
    %c0_25 = arith.constant 0 : index
    %25 = vector.load %arg8[%c0_23, %c0_24, %c0_25] : memref<1x16x32xf32, #tpu.memory_space<vmem>>, vector<1x16x32xf32>
    %26 = vector.shape_cast %25 : vector<1x16x32xf32> to vector<16x32xf32>
    %cst_26 = arith.constant dense<0.000000e+00> : vector<32x32xf32>
    %27 = tpu.matmul %20, %26, %cst_26 {dimension_numbers = #tpu.dot_dimension_numbers<[1], [0], [0], [1], [0, 0, 1, 1], [], []>} : vector<32x16xf32>, vector<16x32xf32>, vector<32x32xf32> -> vector<32x32xf32>
    %28 = arith.addf %24, %27 : vector<32x32xf32>
    %c0_27 = arith.constant 0 : index
    %c0_28 = arith.constant 0 : index
    %29 = vector.load %arg15[%c0_27, %c0_28] : memref<32x32xf32, #tpu.memory_space<vmem>>, vector<32x32xf32>
    tpu.vector_store %arg15[%c0_27, %c0_28], %28 {strides = array<i32>} : memref<32x32xf32, #tpu.memory_space<vmem>>, vector<32x32xf32>,
    %c1_i32 = arith.constant 1 : i32
    %30 = arith.cmpi eq, %arg0, %c1_i32 : i32
    %31 = arith.extui %30 : i1 to i32
    %c0_i32_29 = arith.constant 0 : i32
    %32 = arith.cmpi ne, %31, %c0_i32_29 : i32
    scf.if %32 {
      %c0_30 = arith.constant 0 : index
      %c0_31 = arith.constant 0 : index
      %33 = vector.load %arg15[%c0_30, %c0_31] : memref<32x32xf32, #tpu.memory_space<vmem>>, vector<32x32xf32>
      %cst_32 = arith.constant 0.000000e+00 : f32
      %34 = vector.broadcast %cst_32 : f32 to vector<32x32xf32>
      %35 = arith.maximumf %33, %34 : vector<32x32xf32>
      %c0_33 = arith.constant 0 : index
      %c0_34 = arith.constant 0 : index
      %36 = vector.load %arg10[%c0_33, %c0_34] : memref<32x16xf32, #tpu.memory_space<vmem>>, vector<32x16xf32>
      %c0_35 = arith.constant 0 : index
      %c0_36 = arith.constant 0 : index
      %37 = vector.load %arg11[%c0_35, %c0_36] : memref<1x16xf32, #tpu.memory_space<vmem>>, vector<1x16xf32>
      %cst_37 = arith.constant dense<0.000000e+00> : vector<32x16xf32>
      %38 = tpu.matmul %35, %36, %cst_37 {dimension_numbers = #tpu.dot_dimension_numbers<[1], [0], [0], [1], [0, 0, 1, 1], [], []>} : vector<32x32xf32>, vector<32x16xf32>, vector<32x16xf32> -> vector<32x16xf32>
      %39 = vector.broadcast %37 : vector<1x16xf32> to vector<32x16xf32>
      %40 = arith.addf %38, %39 : vector<32x16xf32>
      %cst_38 = arith.constant 0.000000e+00 : f32
      %41 = vector.broadcast %cst_38 : f32 to vector<32x16xf32>
      %42 = arith.maximumf %40, %41 : vector<32x16xf32>
      %c0_39 = arith.constant 0 : index
      %c0_40 = arith.constant 0 : index
      %43 = vector.load %arg12[%c0_39, %c0_40] : memref<1x16xf32, #tpu.memory_space<vmem>>, vector<1x16xf32>
      %c0_41 = arith.constant 0 : index
      %c0_42 = arith.constant 0 : index
      %44 = vector.load %arg13[%c0_41, %c0_42] : memref<1x1xf32, #tpu.memory_space<vmem>>, vector<1x1xf32>
      %45 = vector.broadcast %43 : vector<1x16xf32> to vector<32x16xf32>
      %46 = arith.mulf %42, %45 : vector<32x16xf32>
      %cst_43 = arith.constant dense<0.000000e+00> : vector<32xf32>
      %47 = vector.multi_reduction <add>, %46, %cst_43 [1] : vector<32x16xf32> to vector<32xf32>
      %48 = vector.shape_cast %47 : vector<32xf32> to vector<32x1xf32>
      %49 = vector.broadcast %44 : vector<1x1xf32> to vector<32x1xf32>
      %50 = arith.addf %48, %49 : vector<32x1xf32>
      %c0_44 = arith.constant 0 : index
      %c0_45 = arith.constant 0 : index
      %51 = vector.load %arg14[%c0_44, %c0_45] : memref<32x1xf32, #tpu.memory_space<vmem>>, vector<32x1xf32>
      tpu.vector_store %arg14[%c0_44, %c0_45], %50 {strides = array<i32>} : memref<32x1xf32, #tpu.memory_space<vmem>>, vector<32x1xf32>,
    } else {
    }
    return
  }
  func.func @transform_0(%arg0: i32) -> (i32, i32, i32) {
    %c0_i32 = arith.constant 0 : i32
    %c0_i32_0 = arith.constant 0 : i32
    %c0_i32_1 = arith.constant 0 : i32
    return %arg0, %c0_i32, %c0_i32_0 : i32, i32, i32
  }
  func.func @transform_1(%arg0: i32) -> (i32, i32) {
    %c0_i32 = arith.constant 0 : i32
    %c0_i32_0 = arith.constant 0 : i32
    %c0_i32_1 = arith.constant 0 : i32
    return %c0_i32, %c0_i32_0 : i32, i32
  }
  func.func @transform_2(%arg0: i32) -> (i32, i32, i32) {
    %c0_i32 = arith.constant 0 : i32
    %c0_i32_0 = arith.constant 0 : i32
    %c0_i32_1 = arith.constant 0 : i32
    return %arg0, %c0_i32, %c0_i32_0 : i32, i32, i32
  }
  func.func @transform_3(%arg0: i32) -> (i32, i32, i32) {
    %c0_i32 = arith.constant 0 : i32
    %c0_i32_0 = arith.constant 0 : i32
    %c0_i32_1 = arith.constant 0 : i32
    return %arg0, %c0_i32, %c0_i32_0 : i32, i32, i32
  }
  func.func @transform_4(%arg0: i32) -> (i32, i32, i32) {
    %c0_i32 = arith.constant 0 : i32
    %c0_i32_0 = arith.constant 0 : i32
    %c0_i32_1 = arith.constant 0 : i32
    return %arg0, %c0_i32, %c0_i32_0 : i32, i32, i32
  }
  func.func @transform_5(%arg0: i32) -> (i32, i32, i32) {
    %c0_i32 = arith.constant 0 : i32
    %c0_i32_0 = arith.constant 0 : i32
    %c0_i32_1 = arith.constant 0 : i32
    return %arg0, %c0_i32, %c0_i32_0 : i32, i32, i32
  }
  func.func @transform_6(%arg0: i32) -> (i32, i32) {
    %c0_i32 = arith.constant 0 : i32
    %c0_i32_0 = arith.constant 0 : i32
    %c0_i32_1 = arith.constant 0 : i32
    return %c0_i32, %c0_i32_0 : i32, i32
  }
  func.func @transform_7(%arg0: i32) -> (i32, i32, i32) {
    %c0_i32 = arith.constant 0 : i32
    %c0_i32_0 = arith.constant 0 : i32
    %c0_i32_1 = arith.constant 0 : i32
    return %arg0, %c0_i32, %c0_i32_0 : i32, i32, i32
  }
  func.func @transform_8(%arg0: i32) -> (i32, i32) {
    %c0_i32 = arith.constant 0 : i32
    %c0_i32_0 = arith.constant 0 : i32
    %c0_i32_1 = arith.constant 0 : i32
    return %c0_i32, %c0_i32_0 : i32, i32
  }
  func.func @transform_9(%arg0: i32) -> (i32, i32) {
    %c0_i32 = arith.constant 0 : i32
    %c0_i32_0 = arith.constant 0 : i32
    %c0_i32_1 = arith.constant 0 : i32
    return %c0_i32, %c0_i32_0 : i32, i32
  }
  func.func @transform_10(%arg0: i32) -> (i32, i32) {
    %c0_i32 = arith.constant 0 : i32
    %c0_i32_0 = arith.constant 0 : i32
    %c0_i32_1 = arith.constant 0 : i32
    return %c0_i32, %c0_i32_0 : i32, i32
  }
  func.func @transform_11(%arg0: i32) -> (i32, i32) {
    %c0_i32 = arith.constant 0 : i32
    %c0_i32_0 = arith.constant 0 : i32
    %c0_i32_1 = arith.constant 0 : i32
    return %c0_i32, %c0_i32_0 : i32, i32
  }
  func.func @transform_12(%arg0: i32) -> (i32, i32) {
    %c0_i32 = arith.constant 0 : i32
    %c0_i32_0 = arith.constant 0 : i32
    %c0_i32_1 = arith.constant 0 : i32
    return %c0_i32, %c0_i32_0 : i32, i32
  }
  func.func @transform_13(%arg0: i32) -> (i32, i32) {
    %c0_i32 = arith.constant 0 : i32
    %c0_i32_0 = arith.constant 0 : i32
    %c0_i32_1 = arith.constant 0 : i32
    return %c0_i32, %c0_i32_0 : i32, i32
  }
}

</mosaic_0001>

<llo_original>
// kernel: tabgnn_forward.1
$region0: #{tabgnn_forward.1}
  #allocation0 [shape = 'u32[]', space=smem, size = 0x4, offset = 0x4, fixed_abs, tag = 'smem constant byte address 0x4 - core index']
  #allocation1 [shape = 'u32[144,128]{1,0:T(1,128)}', space=vmem, size = 0x12000, scoped, tag = 'internal scratch']
  #allocation2 [shape = 'f32[32,32]{1,0:T(8,128)}', space=vmem, size = 0x4000, scoped, tag = 'scratch operand']
  #allocation3 [shape = 'f32[1,1]{1,0:T(1,128)S(1)}', space=vmem, size = 0x200, scoped, tag = 'scoped memory for tabgnn_forward.1']
  %s0 = inlined_call_operand.vmem [shape: f32[2,32,32], index: 0, kind: input, shape index: {}]
  %s1 = inlined_call_operand.vmem [shape: f32[32,16], index: 1, kind: input, shape index: {}]
  %s2 = inlined_call_operand.vmem [shape: f32[2,16,32], index: 2, kind: input, shape index: {}]
  %s3 = inlined_call_operand.vmem [shape: f32[2,1,32], index: 3, kind: input, shape index: {}]
  %s4 = inlined_call_operand.vmem [shape: f32[2,32,16], index: 4, kind: input, shape index: {}]
  %s5 = inlined_call_operand.vmem [shape: f32[2,1,16], index: 5, kind: input, shape index: {}]
  %s6 = inlined_call_operand.vmem [shape: f32[16,32], index: 6, kind: input, shape index: {}]
  %s7 = inlined_call_operand.vmem [shape: f32[2,16,32], index: 7, kind: input, shape index: {}]
  %s8 = inlined_call_operand.vmem [shape: f32[1,32], index: 8, kind: input, shape index: {}]
  %s9 = inlined_call_operand.vmem [shape: f32[32,16], index: 9, kind: input, shape index: {}]
  %s10 = inlined_call_operand.vmem [shape: f32[1,16], index: 10, kind: input, shape index: {}]
  %s11 = inlined_call_operand.vmem [shape: f32[1,16], index: 11, kind: input, shape index: {}]
  %s12 = inlined_call_operand.<no memory space> [shape: f32[1,1], index: 12, kind: input, shape index: {}]
  %s13 = inlined_call_operand.vmem [shape: f32[32,1], index: 13, kind: output, shape index: {}]
  %s14 = sld [smem:[#allocation0]]
  $region93: #{tabgnn_forward.1} parent=0
    _
  %s16 = ssub.s32 1, %s14
  %s17 = scalar_select 0, %s16, %s14
  %v18 = vstv %s12
  %19 = vst [vmem:[#allocation3] sm:$0x1] %v18
  loop: start=0, step=1, limit=4
  $region2: #{tabgnn_forward.1} parent=0 // loop_pre_header
    _
  $region3: #{tabgnn_forward.1} parent=0 // loop_header
    %s21 = sphi 0, %s25
    %p22 = scmp.ge.s32.totalorder %s21, 4
    %s31 = sphi 0, %s33
    %s34 = sphi 0, %s31
    %s35 = sphi 0, %s34
    %s51 = sphi 0, %s35
    %s55 = sphi 0, %s55
    %s57 = sphi 0, %s55
    %s58 = sphi 0, %s57
    %s72 = sphi 0, %s58
    %s78 = sphi 0, %s80
    %s81 = sphi 0, %s78
    %s82 = sphi 0, %s81
    %s98 = sphi 0, %s82
    %s104 = sphi 0, %s106
    %s107 = sphi 0, %s104
    %s108 = sphi 0, %s107
    %s124 = sphi 0, %s108
    %s130 = sphi 0, %s132
    %s133 = sphi 0, %s130
    %s134 = sphi 0, %s133
    %s150 = sphi 0, %s134
    %s156 = sphi 0, %s158
    %s159 = sphi 0, %s156
    %s160 = sphi 0, %s159
    %s176 = sphi 0, %s160
    %s180 = sphi 0, %s180
    %s182 = sphi 0, %s180
    %s183 = sphi 0, %s182
    %s197 = sphi 0, %s183
    %s203 = sphi 0, %s205
    %s206 = sphi 0, %s203
    %s207 = sphi 0, %s206
    %s223 = sphi 0, %s207
    %s227 = sphi 0, %s227
    %s229 = sphi 0, %s227
    %s230 = sphi 0, %s229
    %s244 = sphi 0, %s230
    %s248 = sphi 0, %s248
    %s250 = sphi 0, %s248
    %s251 = sphi 0, %s250
    %s265 = sphi 0, %s251
    %s269 = sphi 0, %s269
    %s271 = sphi 0, %s269
    %s272 = sphi 0, %s271
    %s286 = sphi 0, %s272
    %s290 = sphi 0, %s290
    %s292 = sphi 0, %s290
    %s293 = sphi 0, %s292
    %s307 = sphi 0, %s293
    %s311 = sphi 0, %s311
    %s313 = sphi 0, %s311
    %s314 = sphi 0, %s313
    %s328 = sphi 0, %s314
    %s332 = sphi 0, %s332
    %s334 = sphi 0, %s332
    %s335 = sphi 0, %s334
    %s349 = sphi 0, %s335
  $region4: #{tabgnn_forward.1} parent=0 // loop_header_branch
    %24 = sbr.rel (%p22) target = $region8
  $region5: #{tabgnn_forward.1} parent=0 // loop_body
    %s26 = ssub.s32 %s21, 1
    %s27 = ssub.s32 %s21, 2
    %s28 = sadd.s32 %s21, 1
    %s29 = ssub.s32 %s21, %s28
    %p30 = scmp.eq.s32.totalorder %s29, 0
    %s32 = sadd.s32 %s31, 1
    %s33 = scalar_select %p30, %s31, %s32
    %p36 = pneg %p30
    %p37 = scmp.eq.s32.totalorder %s21, 1
    %p38 = por %p36, %p37
    %p39 = scmp.ne.s32.totalorder %s31, %s34
    %p40 = scmp.eq.s32.totalorder %s21, 0
    %p41 = por %p39, %p40
    %p42 = scmp.ne.s32.totalorder %s31, %s34
    %p43 = scmp.eq.s32.totalorder %s26, 1
    %p44 = por %p42, %p43
    %p45 = scmp.ne.s32.totalorder %s34, %s35
    %p46 = scmp.eq.s32.totalorder %s26, 0
    %p47 = por %p45, %p46
    %p48 = scmp.ne.s32.totalorder %s34, %s35
    %p49 = scmp.eq.s32.totalorder %s27, 1
    %p50 = por %p48, %p49
    %p52 = scmp.ne.s32.totalorder %s35, %s51
    %p53 = scmp.eq.s32.totalorder %s27, 0
    %p54 = por %p52, %p53
    %s56 = sadd.s32 %s55, 1
    %p59 = scmp.eq.s32.totalorder %s21, 1
    %p60 = scmp.ne.s32.totalorder %s55, %s57
    %p61 = scmp.eq.s32.totalorder %s21, 0
    %p62 = por %p60, %p61
    %p63 = scmp.ne.s32.totalorder %s55, %s57
    %p64 = scmp.eq.s32.totalorder %s26, 1
    %p65 = por %p63, %p64
    %p66 = scmp.ne.s32.totalorder %s57, %s58
    %p67 = scmp.eq.s32.totalorder %s26, 0
    %p68 = por %p66, %p67
    %p69 = scmp.ne.s32.totalorder %s57, %s58
    %p70 = scmp.eq.s32.totalorder %s27, 1
    %p71 = por %p69, %p70
    %p73 = scmp.ne.s32.totalorder %s58, %s72
    %p74 = scmp.eq.s32.totalorder %s27, 0
    %p75 = por %p73, %p74
    %s76 = ssub.s32 %s21, %s28
    %p77 = scmp.eq.s32.totalorder %s76, 0
    %s79 = sadd.s32 %s78, 1
    %s80 = scalar_select %p77, %s78, %s79
    %p83 = pneg %p77
    %p84 = scmp.eq.s32.totalorder %s21, 1
    %p85 = por %p83, %p84
    %p86 = scmp.ne.s32.totalorder %s78, %s81
    %p87 = scmp.eq.s32.totalorder %s21, 0
    %p88 = por %p86, %p87
    %p89 = scmp.ne.s32.totalorder %s78, %s81
    %p90 = scmp.eq.s32.totalorder %s26, 1
    %p91 = por %p89, %p90
    %p92 = scmp.ne.s32.totalorder %s81, %s82
    %p93 = scmp.eq.s32.totalorder %s26, 0
    %p94 = por %p92, %p93
    %p95 = scmp.ne.s32.totalorder %s81, %s82
    %p96 = scmp.eq.s32.totalorder %s27, 1
    %p97 = por %p95, %p96
    %p99 = scmp.ne.s32.totalorder %s82, %s98
    %p100 = scmp.eq.s32.totalorder %s27, 0
    %p101 = por %p99, %p100
    %s102 = ssub.s32 %s21, %s28
    %p103 = scmp.eq.s32.totalorder %s102, 0
    %s105 = sadd.s32 %s104, 1
    %s106 = scalar_select %p103, %s104, %s105
    %p109 = pneg %p103
    %p110 = scmp.eq.s32.totalorder %s21, 1
    %p111 = por %p109, %p110
    %p112 = scmp.ne.s32.totalorder %s104, %s107
    %p113 = scmp.eq.s32.totalorder %s21, 0
    %p114 = por %p112, %p113
    %p115 = scmp.ne.s32.totalorder %s104, %s107
    %p116 = scmp.eq.s32.totalorder %s26, 1
    %p117 = por %p115, %p116
    %p118 = scmp.ne.s32.totalorder %s107, %s108
    %p119 = scmp.eq.s32.totalorder %s26, 0
    %p120 = por %p118, %p119
    %p121 = scmp.ne.s32.totalorder %s107, %s108
    %p122 = scmp.eq.s32.totalorder %s27, 1
    %p123 = por %p121, %p122
    %p125 = scmp.ne.s32.totalorder %s108, %s124
    %p126 = scmp.eq.s32.totalorder %s27, 0
    %p127 = por %p125, %p126
    %s128 = ssub.s32 %s21, %s28
    %p129 = scmp.eq.s32.totalorder %s128, 0
    %s131 = sadd.s32 %s130, 1
    %s132 = scalar_select %p129, %s130, %s131
    %p135 = pneg %p129
    %p136 = scmp.eq.s32.totalorder %s21, 1
    %p137 = por %p135, %p136
    %p138 = scmp.ne.s32.totalorder %s130, %s133
    %p139 = scmp.eq.s32.totalorder %s21, 0
    %p140 = por %p138, %p139
    %p141 = scmp.ne.s32.totalorder %s130, %s133
    %p142 = scmp.eq.s32.totalorder %s26, 1
    %p143 = por %p141, %p142
    %p144 = scmp.ne.s32.totalorder %s133, %s134
    %p145 = scmp.eq.s32.totalorder %s26, 0
    %p146 = por %p144, %p145
    %p147 = scmp.ne.s32.totalorder %s133, %s134
    %p148 = scmp.eq.s32.totalorder %s27, 1
    %p149 = por %p147, %p148
    %p151 = scmp.ne.s32.totalorder %s134, %s150
    %p152 = scmp.eq.s32.totalorder %s27, 0
    %p153 = por %p151, %p152
    %s154 = ssub.s32 %s21, %s28
    %p155 = scmp.eq.s32.totalorder %s154, 0
    %s157 = sadd.s32 %s156, 1
    %s158 = scalar_select %p155, %s156, %s157
    %p161 = pneg %p155
    %p162 = scmp.eq.s32.totalorder %s21, 1
    %p163 = por %p161, %p162
    %p164 = scmp.ne.s32.totalorder %s156, %s159
    %p165 = scmp.eq.s32.totalorder %s21, 0
    %p166 = por %p164, %p165
    %p167 = scmp.ne.s32.totalorder %s156, %s159
    %p168 = scmp.eq.s32.totalorder %s26, 1
    %p169 = por %p167, %p168
    %p170 = scmp.ne.s32.totalorder %s159, %s160
    %p171 = scmp.eq.s32.totalorder %s26, 0
    %p172 = por %p170, %p171
    %p173 = scmp.ne.s32.totalorder %s159, %s160
    %p174 = scmp.eq.s32.totalorder %s27, 1
    %p175 = por %p173, %p174
    %p177 = scmp.ne.s32.totalorder %s160, %s176
    %p178 = scmp.eq.s32.totalorder %s27, 0
    %p179 = por %p177, %p178
    %s181 = sadd.s32 %s180, 1
    %p184 = scmp.eq.s32.totalorder %s21, 1
    %p185 = scmp.ne.s32.totalorder %s180, %s182
    %p186 = scmp.eq.s32.totalorder %s21, 0
    %p187 = por %p185, %p186
    %p188 = scmp.ne.s32.totalorder %s180, %s182
    %p189 = scmp.eq.s32.totalorder %s26, 1
    %p190 = por %p188, %p189
    %p191 = scmp.ne.s32.totalorder %s182, %s183
    %p192 = scmp.eq.s32.totalorder %s26, 0
    %p193 = por %p191, %p192
    %p194 = scmp.ne.s32.totalorder %s182, %s183
    %p195 = scmp.eq.s32.totalorder %s27, 1
    %p196 = por %p194, %p195
    %p198 = scmp.ne.s32.totalorder %s183, %s197
    %p199 = scmp.eq.s32.totalorder %s27, 0
    %p200 = por %p198, %p199
    %s201 = ssub.s32 %s21, %s28
    %p202 = scmp.eq.s32.totalorder %s201, 0
    %s204 = sadd.s32 %s203, 1
    %s205 = scalar_select %p202, %s203, %s204
    %p208 = pneg %p202
    %p209 = scmp.eq.s32.totalorder %s21, 1
    %p210 = por %p208, %p209
    %p211 = scmp.ne.s32.totalorder %s203, %s206
    %p212 = scmp.eq.s32.totalorder %s21, 0
    %p213 = por %p211, %p212
    %p214 = scmp.ne.s32.totalorder %s203, %s206
    %p215 = scmp.eq.s32.totalorder %s26, 1
    %p216 = por %p214, %p215
    %p217 = scmp.ne.s32.totalorder %s206, %s207
    %p218 = scmp.eq.s32.totalorder %s26, 0
    %p219 = por %p217, %p218
    %p220 = scmp.ne.s32.totalorder %s206, %s207
    %p221 = scmp.eq.s32.totalorder %s27, 1
    %p222 = por %p220, %p221
    %p224 = scmp.ne.s32.totalorder %s207, %s223
    %p225 = scmp.eq.s32.totalorder %s27, 0
    %p226 = por %p224, %p225
    %s228 = sadd.s32 %s227, 1
    %p231 = scmp.eq.s32.totalorder %s21, 1
    %p232 = scmp.ne.s32.totalorder %s227, %s229
    %p233 = scmp.eq.s32.totalorder %s21, 0
    %p234 = por %p232, %p233
    %p235 = scmp.ne.s32.totalorder %s227, %s229
    %p236 = scmp.eq.s32.totalorder %s26, 1
    %p237 = por %p235, %p236
    %p238 = scmp.ne.s32.totalorder %s229, %s230
    %p239 = scmp.eq.s32.totalorder %s26, 0
    %p240 = por %p238, %p239
    %p241 = scmp.ne.s32.totalorder %s229, %s230
    %p242 = scmp.eq.s32.totalorder %s27, 1
    %p243 = por %p241, %p242
    %p245 = scmp.ne.s32.totalorder %s230, %s244
    %p246 = scmp.eq.s32.totalorder %s27, 0
    %p247 = por %p245, %p246
    %s249 = sadd.s32 %s248, 1
    %p252 = scmp.eq.s32.totalorder %s21, 1
    %p253 = scmp.ne.s32.totalorder %s248, %s250
    %p254 = scmp.eq.s32.totalorder %s21, 0
    %p255 = por %p253, %p254
    %p256 = scmp.ne.s32.totalorder %s248, %s250
    %p257 = scmp.eq.s32.totalorder %s26, 1
    %p258 = por %p256, %p257
    %p259 = scmp.ne.s32.totalorder %s250, %s251
    %p260 = scmp.eq.s32.totalorder %s26, 0
    %p261 = por %p259, %p260
    %p262 = scmp.ne.s32.totalorder %s250, %s251
    %p263 = scmp.eq.s32.totalorder %s27, 1
    %p264 = por %p262, %p263
    %p266 = scmp.ne.s32.totalorder %s251, %s265
    %p267 = scmp.eq.s32.totalorder %s27, 0
    %p268 = por %p266, %p267
    %s270 = sadd.s32 %s269, 1
    %p273 = scmp.eq.s32.totalorder %s21, 1
    %p274 = scmp.ne.s32.totalorder %s269, %s271
    %p275 = scmp.eq.s32.totalorder %s21, 0
    %p276 = por %p274, %p275
    %p277 = scmp.ne.s32.totalorder %s269, %s271
    %p278 = scmp.eq.s32.totalorder %s26, 1
    %p279 = por %p277, %p278
    %p280 = scmp.ne.s32.totalorder %s271, %s272
    %p281 = scmp.eq.s32.totalorder %s26, 0
    %p282 = por %p280, %p281
    %p283 = scmp.ne.s32.totalorder %s271, %s272
    %p284 = scmp.eq.s32.totalorder %s27, 1
    %p285 = por %p283, %p284
    %p287 = scmp.ne.s32.totalorder %s272, %s286
    %p288 = scmp.eq.s32.totalorder %s27, 0
    %p289 = por %p287, %p288
    %s291 = sadd.s32 %s290, 1
    %p294 = scmp.eq.s32.totalorder %s21, 1
    %p295 = scmp.ne.s32.totalorder %s290, %s292
    %p296 = scmp.eq.s32.totalorder %s21, 0
    %p297 = por %p295, %p296
    %p298 = scmp.ne.s32.totalorder %s290, %s292
    %p299 = scmp.eq.s32.totalorder %s26, 1
    %p300 = por %p298, %p299
    %p301 = scmp.ne.s32.totalorder %s292, %s293
    %p302 = scmp.eq.s32.totalorder %s26, 0
    %p303 = por %p301, %p302
    %p304 = scmp.ne.s32.totalorder %s292, %s293
    %p305 = scmp.eq.s32.totalorder %s27, 1
    %p306 = por %p304, %p305
    %p308 = scmp.ne.s32.totalorder %s293, %s307
    %p309 = scmp.eq.s32.totalorder %s27, 0
    %p310 = por %p308, %p309
    %s312 = sadd.s32 %s311, 1
    %p315 = scmp.eq.s32.totalorder %s21, 1
    %p316 = scmp.ne.s32.totalorder %s311, %s313
    %p317 = scmp.eq.s32.totalorder %s21, 0
    %p318 = por %p316, %p317
    %p319 = scmp.ne.s32.totalorder %s311, %s313
    %p320 = scmp.eq.s32.totalorder %s26, 1
    %p321 = por %p319, %p320
    %p322 = scmp.ne.s32.totalorder %s313, %s314
    %p323 = scmp.eq.s32.totalorder %s26, 0
    %p324 = por %p322, %p323
    %p325 = scmp.ne.s32.totalorder %s313, %s314
    %p326 = scmp.eq.s32.totalorder %s27, 1
    %p327 = por %p325, %p326
    %p329 = scmp.ne.s32.totalorder %s314, %s328
    %p330 = scmp.eq.s32.totalorder %s27, 0
    %p331 = por %p329, %p330
    %s333 = sadd.s32 %s332, 1
    %p336 = scmp.eq.s32.totalorder %s21, 1
    %p337 = scmp.ne.s32.totalorder %s332, %s334
    %p338 = scmp.eq.s32.totalorder %s21, 0
    %p339 = por %p337, %p338
    %p340 = scmp.ne.s32.totalorder %s332, %s334
    %p341 = scmp.eq.s32.totalorder %s26, 1
    %p342 = por %p340, %p341
    %p343 = scmp.ne.s32.totalorder %s334, %s335
    %p344 = scmp.eq.s32.totalorder %s26, 0
    %p345 = por %p343, %p344
    %p346 = scmp.ne.s32.totalorder %s334, %s335
    %p347 = scmp.eq.s32.totalorder %s27, 1
    %p348 = por %p346, %p347
    %p350 = scmp.ne.s32.totalorder %s335, %s349
    %p351 = scmp.eq.s32.totalorder %s27, 0
    %p352 = por %p350, %p351
    %p353 = scmp.le.s32.totalorder 1, %s21
    %p354 = scmp.lt.s32.totalorder %s21, 3
    %p355 = pnand %p353, %p354
    %p356 = pneg %p355
    // Predicated region
    $region9: #{tabgnn_forward.1} parent=5 // pred_check
      _
    $region10: #{tabgnn_forward.1} parent=5 // pred_check_branch
      %358 = sbr.rel (%p355) target = $region12
    $region11: #{tabgnn_forward.1} parent=5 // pred_region
      %s359 = ssub.s32 %s21, 1
      // Predicated region
      $region13: #{tabgnn_forward.1} parent=11 // pred_check
        %p360 = pneg %p68
      $region14: #{tabgnn_forward.1} parent=11 // pred_check_branch
        %362 = sbr.rel (%p360) target = $region16
      $region15: #{tabgnn_forward.1} parent=11 // pred_region
        _
      $region16: #{tabgnn_forward.1} parent=11 // pred_fallthru
        _
      // Predicated region
      $region17: #{tabgnn_forward.1} parent=11 // pred_check
        %p363 = pneg %p193
      $region18: #{tabgnn_forward.1} parent=11 // pred_check_branch
        %365 = sbr.rel (%p363) target = $region20
      $region19: #{tabgnn_forward.1} parent=11 // pred_region
        _
      $region20: #{tabgnn_forward.1} parent=11 // pred_fallthru
        _
      // Predicated region
      $region21: #{tabgnn_forward.1} parent=11 // pred_check
        %p366 = pneg %p240
      $region22: #{tabgnn_forward.1} parent=11 // pred_check_branch
        %368 = sbr.rel (%p366) target = $region24
      $region23: #{tabgnn_forward.1} parent=11 // pred_region
        _
      $region24: #{tabgnn_forward.1} parent=11 // pred_fallthru
        _
      // Predicated region
      $region25: #{tabgnn_forward.1} parent=11 // pred_check
        %p369 = pneg %p261
      $region26: #{tabgnn_forward.1} parent=11 // pred_check_branch
        %371 = sbr.rel (%p369) target = $region28
      $region27: #{tabgnn_forward.1} parent=11 // pred_region
        _
      $region28: #{tabgnn_forward.1} parent=11 // pred_fallthru
        _
      // Predicated region
      $region29: #{tabgnn_forward.1} parent=11 // pred_check
        %p372 = pneg %p282
      $region30: #{tabgnn_forward.1} parent=11 // pred_check_branch
        %374 = sbr.rel (%p372) target = $region32
      $region31: #{tabgnn_forward.1} parent=11 // pred_region
        _
      $region32: #{tabgnn_forward.1} parent=11 // pred_fallthru
        _
      // Predicated region
      $region33: #{tabgnn_forward.1} parent=11 // pred_check
        %p375 = pneg %p303
      $region34: #{tabgnn_forward.1} parent=11 // pred_check_branch
        %377 = sbr.rel (%p375) target = $region36
      $region35: #{tabgnn_forward.1} parent=11 // pred_region
        _
      $region36: #{tabgnn_forward.1} parent=11 // pred_fallthru
        _
      // Predicated region
      $region37: #{tabgnn_forward.1} parent=11 // pred_check
        %p378 = pneg %p324
      $region38: #{tabgnn_forward.1} parent=11 // pred_check_branch
        %380 = sbr.rel (%p378) target = $region40
      $region39: #{tabgnn_forward.1} parent=11 // pred_region
        _
      $region40: #{tabgnn_forward.1} parent=11 // pred_fallthru
        _
    $region12: #{tabgnn_forward.1} parent=5 // pred_fallthru
      _
    %p381 = scmp.lt.s32.totalorder %s21, 2
    // Predicated region
    $region41: #{tabgnn_forward.1} parent=5 // pred_check
      %p382 = pneg %p381
    $region42: #{tabgnn_forward.1} parent=5 // pred_check_branch
      %384 = sbr.rel (%p382) target = $region44
    $region43: #{tabgnn_forward.1} parent=5 // pred_region
      // Predicated region
      $region45: #{tabgnn_forward.1} parent=43 // pred_check
        %p385 = pneg %p41
      $region46: #{tabgnn_forward.1} parent=43 // pred_check_branch
        %387 = sbr.rel (%p385) target = $region48
      $region47: #{tabgnn_forward.1} parent=43 // pred_region
        %p388 = scmp.lt.s32.totalorder %s21, 1
        %s389 = scalar_select %p388, %s21, 1
        %s390 = smul.addr %s389, 4
        %s391 = smul.addr %s390, 8
        %s392 = scalar_lea.vmem %s0, %s391
      $region48: #{tabgnn_forward.1} parent=43 // pred_fallthru
        _
      // Predicated region
      $region49: #{tabgnn_forward.1} parent=43 // pred_check
        %p393 = pneg %p88
      $region50: #{tabgnn_forward.1} parent=43 // pred_check_branch
        %395 = sbr.rel (%p393) target = $region52
      $region51: #{tabgnn_forward.1} parent=43 // pred_region
        %p396 = scmp.lt.s32.totalorder %s21, 1
        %s397 = scalar_select %p396, %s21, 1
        %s398 = smul.addr %s397, 2
        %s399 = smul.addr %s398, 8
        %s400 = scalar_lea.vmem %s2, %s399
      $region52: #{tabgnn_forward.1} parent=43 // pred_fallthru
        _
      // Predicated region
      $region53: #{tabgnn_forward.1} parent=43 // pred_check
        %p401 = pneg %p114
      $region54: #{tabgnn_forward.1} parent=43 // pred_check_branch
        %403 = sbr.rel (%p401) target = $region56
      $region55: #{tabgnn_forward.1} parent=43 // pred_region
        %p404 = scmp.lt.s32.totalorder %s21, 1
        %s405 = scalar_select %p404, %s21, 1
        %s406 = scalar_lea.vmem %s3, %s405
      $region56: #{tabgnn_forward.1} parent=43 // pred_fallthru
        _
      // Predicated region
      $region57: #{tabgnn_forward.1} parent=43 // pred_check
        %p407 = pneg %p140
      $region58: #{tabgnn_forward.1} parent=43 // pred_check_branch
        %409 = sbr.rel (%p407) target = $region60
      $region59: #{tabgnn_forward.1} parent=43 // pred_region
        %p410 = scmp.lt.s32.totalorder %s21, 1
        %s411 = scalar_select %p410, %s21, 1
        %s412 = smul.addr %s411, 4
        %s413 = smul.addr %s412, 8
        %s414 = scalar_lea.vmem %s4, %s413
      $region60: #{tabgnn_forward.1} parent=43 // pred_fallthru
        _
      // Predicated region
      $region61: #{tabgnn_forward.1} parent=43 // pred_check
        %p415 = pneg %p166
      $region62: #{tabgnn_forward.1} parent=43 // pred_check_branch
        %417 = sbr.rel (%p415) target = $region64
      $region63: #{tabgnn_forward.1} parent=43 // pred_region
        %p418 = scmp.lt.s32.totalorder %s21, 1
        %s419 = scalar_select %p418, %s21, 1
        %s420 = scalar_lea.vmem %s5, %s419
      $region64: #{tabgnn_forward.1} parent=43 // pred_fallthru
        _
      // Predicated region
      $region65: #{tabgnn_forward.1} parent=43 // pred_check
        %p421 = pneg %p213
      $region66: #{tabgnn_forward.1} parent=43 // pred_check_branch
        %423 = sbr.rel (%p421) target = $region68
      $region67: #{tabgnn_forward.1} parent=43 // pred_region
        %p424 = scmp.lt.s32.totalorder %s21, 1
        %s425 = scalar_select %p424, %s21, 1
        %s426 = smul.addr %s425, 2
        %s427 = smul.addr %s426, 8
        %s428 = scalar_lea.vmem %s7, %s427
      $region68: #{tabgnn_forward.1} parent=43 // pred_fallthru
        _
    $region44: #{tabgnn_forward.1} parent=5 // pred_fallthru
      _
    %p429 = scmp.le.s32.totalorder 1, %s21
    %p430 = scmp.lt.s32.totalorder %s21, 3
    %p431 = pnand %p429, %p430
    %p432 = pneg %p431
    // Predicated region
    $region69: #{tabgnn_forward.1} parent=5 // pred_check
      _
    $region70: #{tabgnn_forward.1} parent=5 // pred_check_branch
      %434 = sbr.rel (%p431) target = $region72
    $region71: #{tabgnn_forward.1} parent=5 // pred_region
      %s435 = ssub.s32 %s21, 1
      %p436 = scmp.lt.s32.totalorder %s26, 1
      %s437 = scalar_select %p436, %s26, 1
      %s438 = smul.addr %s437, 4
      %s439 = smul.addr %s438, 8
      %s440 = scalar_lea.vmem %s0, %s439
      %p441 = pneg %p47
      %p442 = pneg %p44
      %p443 = pneg %p68
      %p444 = pneg %p65
      %p445 = scmp.lt.s32.totalorder %s26, 1
      %s446 = scalar_select %p445, %s26, 1
      %s447 = smul.addr %s446, 2
      %s448 = smul.addr %s447, 8
      %s449 = scalar_lea.vmem %s2, %s448
      %p450 = pneg %p94
      %p451 = pneg %p91
      %p452 = scmp.lt.s32.totalorder %s26, 1
      %s453 = scalar_select %p452, %s26, 1
      %s454 = scalar_lea.vmem %s3, %s453
      %p455 = pneg %p120
      %p456 = pneg %p117
      %p457 = scmp.lt.s32.totalorder %s26, 1
      %s458 = scalar_select %p457, %s26, 1
      %s459 = smul.addr %s458, 4
      %s460 = smul.addr %s459, 8
      %s461 = scalar_lea.vmem %s4, %s460
      %p462 = pneg %p146
      %p463 = pneg %p143
      %p464 = scmp.lt.s32.totalorder %s26, 1
      %s465 = scalar_select %p464, %s26, 1
      %s466 = scalar_lea.vmem %s5, %s465
      %p467 = pneg %p172
      %p468 = pneg %p169
      %p469 = pneg %p193
      %p470 = pneg %p190
      %p471 = scmp.lt.s32.totalorder %s26, 1
      %s472 = scalar_select %p471, %s26, 1
      %s473 = smul.addr %s472, 2
      %s474 = smul.addr %s473, 8
      %s475 = scalar_lea.vmem %s7, %s474
      %p476 = pneg %p219
      %p477 = pneg %p216
      %p478 = pneg %p240
      %p479 = pneg %p237
      %p480 = pneg %p261
      %p481 = pneg %p258
      %p482 = pneg %p282
      %p483 = pneg %p279
      %p484 = pneg %p303
      %p485 = pneg %p300
      %p486 = pneg %p324
      %p487 = pneg %p321
      %p488 = pneg %p345
      %p489 = pneg %p342
      %p490 = scmp.lt.s32.totalorder %s26, 1
      %s491 = scalar_select %p490, %s26, 1
      %s492 = smul.addr %s491, 4
      %s493 = smul.addr %s492, 8
      %s494 = scalar_lea.vmem %s0, %s493
      %p495 = scmp.lt.s32.totalorder %s26, 1
      %s496 = scalar_select %p495, %s26, 1
      %s497 = smul.addr %s496, 2
      %s498 = smul.addr %s497, 8
      %s499 = scalar_lea.vmem %s2, %s498
      %p500 = scmp.lt.s32.totalorder %s26, 1
      %s501 = scalar_select %p500, %s26, 1
      %s502 = scalar_lea.vmem %s3, %s501
      %p503 = scmp.lt.s32.totalorder %s26, 1
      %s504 = scalar_select %p503, %s26, 1
      %s505 = smul.addr %s504, 4
      %s506 = smul.addr %s505, 8
      %s507 = scalar_lea.vmem %s4, %s506
      %p508 = scmp.lt.s32.totalorder %s26, 1
      %s509 = scalar_select %p508, %s26, 1
      %s510 = scalar_lea.vmem %s5, %s509
      %p511 = scmp.lt.s32.totalorder %s26, 1
      %s512 = scalar_select %p511, %s26, 1
      %s513 = smul.addr %s512, 2
      %s514 = smul.addr %s513, 8
      %s515 = scalar_lea.vmem %s7, %s514
      %v516 = vld [vmem:[%s494] sm:$0xff]
      %v517 = vld [vmem:[%s494 + $0x8] sm:$0xff]
      %v518 = vld [vmem:[%s494 + $0x10] sm:$0xff]
      %v519 = vld [vmem:[%s494 + $0x18] sm:$0xff]
      %v520 = vld [vmem:[%s1] sm:$0xff]
      %v521 = vld [vmem:[%s1 + $0x8] sm:$0xff]
      %v522 = vld [vmem:[%s1 + $0x10] sm:$0xff]
      %v523 = vld [vmem:[%s1 + $0x18] sm:$0xff]
      %v524 = vld [vmem:[%s499] sm:$0xff]
      %v525 = vld [vmem:[%s499 + $0x8] sm:$0xff]
      %v526 = vld [vmem:[%s502] sm:$0x1]
      %vm527 = vcmask 130048
      %v529 = vsel %vm527, %v520, 0
      %v532 = vsel %vm527, %v521, 0
      %v535 = vsel %vm527, %v522, 0
      %v538 = vsel %vm527, %v523, 0
      %540 = vmatprep.subr.mxu0 0.0
      %541 = vmatpush1.msra.mxu0 0.0
      %542 = vmatprep.subr.mxu0 0.0
      %543 = vmatpush1.msra.mxu0 0.0
      %544 = vmatprep.subr.mxu0 0.0
      %545 = vmatpush1.msra.mxu0 0.0
      %546 = vmatprep.subr.mxu0 0.0
      %547 = vmatpush1.msra.mxu0 0.0
      %548 = vmatprep.subr.mxu0 0.0
      %549 = vmatpush1.msra.mxu0 0.0
      %550 = vmatprep.subr.mxu0 0.0
      %551 = vmatpush1.msra.mxu0 0.0
      %552 = vmatprep.subr.mxu0 0.0
      %553 = vmatpush1.msra.mxu0 0.0
      %554 = vmatprep.subr.mxu0 0.0
      %555 = vmatpush1.msra.mxu0 0.0
      %556 = vmatprep.subr.mxu0 0.0
      %557 = vmatpush1.msra.mxu0 0.0
      %558 = vmatprep.subr.mxu0 0.0
      %559 = vmatpush1.msra.mxu0 0.0
      %560 = vmatprep.subr.mxu0 0.0
      %561 = vmatpush1.msra.mxu0 0.0
      %562 = vmatprep.subr.mxu0 0.0
      %563 = vmatpush1.msra.mxu0 0.0
      %564 = vmatprep.subr.mxu0 0.0
      %565 = vmatpush1.msra.mxu0 0.0
      %566 = vmatprep.subr.mxu0 0.0
      %567 = vmatpush1.msra.mxu0 0.0
      %568 = vmatprep.subr.mxu0 0.0
      %569 = vmatpush1.msra.mxu0 %v525
      %570 = vmatprep.subr.mxu0 0.0
      %571 = vmatpush1.msra.mxu0 %v524
      %572 = vmatprep.subr.mxu0 0.0
      %573 = vmatpush2.msra.mxu0 0.0
      %574 = vmatprep.subr.mxu0 0.0
      %575 = vmatpush2.msra.mxu0 0.0
      %576 = vmatprep.subr.mxu0 0.0
      %577 = vmatpush2.msra.mxu0 0.0
      %578 = vmatprep.subr.mxu0 0.0
      %579 = vmatpush2.msra.mxu0 0.0
      %580 = vmatprep.subr.mxu0 0.0
      %581 = vmatpush2.msra.mxu0 0.0
      %582 = vmatprep.subr.mxu0 0.0
      %583 = vmatpush2.msra.mxu0 0.0
      %584 = vmatprep.subr.mxu0 0.0
      %585 = vmatpush2.msra.mxu0 0.0
      %586 = vmatprep.subr.mxu0 0.0
      %587 = vmatpush2.msra.mxu0 0.0
      %588 = vmatprep.subr.mxu0 0.0
      %589 = vmatpush2.msra.mxu0 0.0
      %590 = vmatprep.subr.mxu0 0.0
      %591 = vmatpush2.msra.mxu0 0.0
      %592 = vmatprep.subr.mxu0 0.0
      %593 = vmatpush2.msra.mxu0 0.0
      %594 = vmatprep.subr.mxu0 0.0
      %595 = vmatpush2.msra.mxu0 0.0
      %596 = vmatprep.subr.mxu0 0.0
      %597 = vmatpush2.msra.mxu0 0.0
      %598 = vmatprep.subr.mxu0 0.0
      %599 = vmatpush2.msra.mxu0 0.0
      %600 = vmatprep.subr.mxu0 0.0
      %601 = vmatpush2.msra.mxu0 0.0
      %602 = vmatprep.subr.mxu0 0.0
      %603 = vmatpush2.msra.mxu0 0.0
      %604 = vmatprep.mubr.f32.mxu0 0.0
      %605 = vmatmul.mubr.f32.gmra.mxu0 %v529
      %v606 = vpop.f32.mrf.mxu0
      %v607 = vadd.f32 0.0, %v606
      %v608 = vpop.f32.mrf.mxu0
      %609 = vmatprep.mubr.f32.mxu0 0.0
      %610 = vmatmul.mubr.f32.gmra.mxu0 %v532
      %v611 = vpop.f32.mrf.mxu0
      %v612 = vadd.f32 0.0, %v611
      %v613 = vpop.f32.mrf.mxu0
      %614 = vmatprep.mubr.f32.mxu0 0.0
      %615 = vmatmul.mubr.f32.gmra.mxu0 %v535
      %v616 = vpop.f32.mrf.mxu0
      %v617 = vadd.f32 0.0, %v616
      %v618 = vpop.f32.mrf.mxu0
      %619 = vmatprep.mubr.f32.mxu0 0.0
      %620 = vmatmul.mubr.f32.gmra.mxu0 %v538
      %v621 = vpop.f32.mrf.mxu0
      %v622 = vadd.f32 0.0, %v621
      %v623 = vpop.f32.mrf.mxu0
      %624 = vdwg.mxu0
      %v626 = vlaneseq
      %v627 = vshrl.u32 %v626, 7
      %v628 = vsub.s32 0, %v627
      %v629 = vrot.slane %v526, %v628
      %vm631 = vcmask 261120
      %v633 = vsel %vm631, %v516, 0
      %v636 = vsel %vm631, %v517, 0
      %v639 = vsel %vm631, %v518, 0
      %v642 = vsel %vm631, %v519, 0
      %644 = vmatprep.subr.mxu0 0.0
      %645 = vmatpush1.msra.mxu0 0.0
      %646 = vmatprep.subr.mxu0 0.0
      %647 = vmatpush1.msra.mxu0 0.0
      %648 = vmatprep.subr.mxu0 0.0
      %649 = vmatpush1.msra.mxu0 0.0
      %650 = vmatprep.subr.mxu0 0.0
      %651 = vmatpush1.msra.mxu0 0.0
      %652 = vmatprep.subr.mxu0 0.0
      %653 = vmatpush1.msra.mxu0 0.0
      %654 = vmatprep.subr.mxu0 0.0
      %655 = vmatpush1.msra.mxu0 0.0
      %656 = vmatprep.subr.mxu0 0.0
      %657 = vmatpush1.msra.mxu0 0.0
      %658 = vmatprep.subr.mxu0 0.0
      %659 = vmatpush1.msra.mxu0 0.0
      %660 = vmatprep.subr.mxu0 0.0
      %661 = vmatpush1.msra.mxu0 0.0
      %662 = vmatprep.subr.mxu0 0.0
      %663 = vmatpush1.msra.mxu0 0.0
      %664 = vmatprep.subr.mxu0 0.0
      %665 = vmatpush1.msra.mxu0 0.0
      %666 = vmatprep.subr.mxu0 0.0
      %667 = vmatpush1.msra.mxu0 0.0
      %668 = vmatprep.subr.mxu0 0.0
      %669 = vmatpush1.msra.mxu0 %v622
      %670 = vmatprep.subr.mxu0 0.0
      %671 = vmatpush1.msra.mxu0 %v617
      %672 = vmatprep.subr.mxu0 0.0
      %673 = vmatpush1.msra.mxu0 %v612
      %674 = vmatprep.subr.mxu0 0.0
      %675 = vmatpush1.msra.mxu0 %v607
      %676 = vmatprep.subr.mxu0 0.0
      %677 = vmatpush2.msra.mxu0 0.0
      %678 = vmatprep.subr.mxu0 0.0
      %679 = vmatpush2.msra.mxu0 0.0
      %680 = vmatprep.subr.mxu0 0.0
      %681 = vmatpush2.msra.mxu0 0.0
      %682 = vmatprep.subr.mxu0 0.0
      %683 = vmatpush2.msra.mxu0 0.0
      %684 = vmatprep.subr.mxu0 0.0
      %685 = vmatpush2.msra.mxu0 0.0
      %686 = vmatprep.subr.mxu0 0.0
      %687 = vmatpush2.msra.mxu0 0.0
      %688 = vmatprep.subr.mxu0 0.0
      %689 = vmatpush2.msra.mxu0 0.0
      %690 = vmatprep.subr.mxu0 0.0
      %691 = vmatpush2.msra.mxu0 0.0
      %692 = vmatprep.subr.mxu0 0.0
      %693 = vmatpush2.msra.mxu0 0.0
      %694 = vmatprep.subr.mxu0 0.0
      %695 = vmatpush2.msra.mxu0 0.0
      %696 = vmatprep.subr.mxu0 0.0
      %697 = vmatpush2.msra.mxu0 0.0
      %698 = vmatprep.subr.mxu0 0.0
      %699 = vmatpush2.msra.mxu0 0.0
      %700 = vmatprep.subr.mxu0 0.0
      %701 = vmatpush2.msra.mxu0 0.0
      %702 = vmatprep.subr.mxu0 0.0
      %703 = vmatpush2.msra.mxu0 0.0
      %704 = vmatprep.subr.mxu0 0.0
      %705 = vmatpush2.msra.mxu0 0.0
      %706 = vmatprep.subr.mxu0 0.0
      %707 = vmatpush2.msra.mxu0 0.0
      %708 = vmatprep.mubr.f32.mxu0 0.0
      %709 = vmatmul.mubr.f32.gmra.mxu0 %v633
      %v710 = vpop.f32.mrf.mxu0
      %v711 = vadd.f32 %v629, %v710
      %v712 = vpop.f32.mrf.mxu0
      %713 = vmatprep.mubr.f32.mxu0 0.0
      %714 = vmatmul.mubr.f32.gmra.mxu0 %v636
      %v715 = vpop.f32.mrf.mxu0
      %v716 = vadd.f32 %v629, %v715
      %v717 = vpop.f32.mrf.mxu0
      %718 = vmatprep.mubr.f32.mxu0 0.0
      %719 = vmatmul.mubr.f32.gmra.mxu0 %v639
      %v720 = vpop.f32.mrf.mxu0
      %v721 = vadd.f32 %v629, %v720
      %v722 = vpop.f32.mrf.mxu0
      %723 = vmatprep.mubr.f32.mxu0 0.0
      %724 = vmatmul.mubr.f32.gmra.mxu0 %v642
      %v725 = vpop.f32.mrf.mxu0
      %v726 = vadd.f32 %v629, %v725
      %v727 = vpop.f32.mrf.mxu0
      %728 = vdwg.mxu0
      %v729 = vmax.f32 %v711, 0.0
      %v730 = vmax.f32 %v716, 0.0
      %v731 = vmax.f32 %v721, 0.0
      %v732 = vmax.f32 %v726, 0.0
      %v733 = vld [vmem:[%s507] sm:$0xff]
      %v734 = vld [vmem:[%s507 + $0x8] sm:$0xff]
      %v735 = vld [vmem:[%s507 + $0x10] sm:$0xff]
      %v736 = vld [vmem:[%s507 + $0x18] sm:$0xff]
      %v737 = vld [vmem:[%s510] sm:$0x1]
      %v739 = vsel %vm631, %v729, 0
      %v742 = vsel %vm631, %v730, 0
      %v745 = vsel %vm631, %v731, 0
      %v748 = vsel %vm631, %v732, 0
      %750 = vmatprep.subr.mxu0 0.0
      %751 = vmatpush1.msra.mxu0 0.0
      %752 = vmatprep.subr.mxu0 0.0
      %753 = vmatpush1.msra.mxu0 0.0
      %754 = vmatprep.subr.mxu0 0.0
      %755 = vmatpush1.msra.mxu0 0.0
      %756 = vmatprep.subr.mxu0 0.0
      %757 = vmatpush1.msra.mxu0 0.0
      %758 = vmatprep.subr.mxu0 0.0
      %759 = vmatpush1.msra.mxu0 0.0
      %760 = vmatprep.subr.mxu0 0.0
      %761 = vmatpush1.msra.mxu0 0.0
      %762 = vmatprep.subr.mxu0 0.0
      %763 = vmatpush1.msra.mxu0 0.0
      %764 = vmatprep.subr.mxu0 0.0
      %765 = vmatpush1.msra.mxu0 0.0
      %766 = vmatprep.subr.mxu0 0.0
      %767 = vmatpush1.msra.mxu0 0.0
      %768 = vmatprep.subr.mxu0 0.0
      %769 = vmatpush1.msra.mxu0 0.0
      %770 = vmatprep.subr.mxu0 0.0
      %771 = vmatpush1.msra.mxu0 0.0
      %772 = vmatprep.subr.mxu0 0.0
      %773 = vmatpush1.msra.mxu0 0.0
      %774 = vmatprep.subr.mxu0 0.0
      %775 = vmatpush1.msra.mxu0 %v736
      %776 = vmatprep.subr.mxu0 0.0
      %777 = vmatpush1.msra.mxu0 %v735
      %778 = vmatprep.subr.mxu0 0.0
      %779 = vmatpush1.msra.mxu0 %v734
      %780 = vmatprep.subr.mxu0 0.0
      %781 = vmatpush1.msra.mxu0 %v733
      %782 = vmatprep.subr.mxu0 0.0
      %783 = vmatpush2.msra.mxu0 0.0
      %784 = vmatprep.subr.mxu0 0.0
      %785 = vmatpush2.msra.mxu0 0.0
      %786 = vmatprep.subr.mxu0 0.0
      %787 = vmatpush2.msra.mxu0 0.0
      %788 = vmatprep.subr.mxu0 0.0
      %789 = vmatpush2.msra.mxu0 0.0
      %790 = vmatprep.subr.mxu0 0.0
      %791 = vmatpush2.msra.mxu0 0.0
      %792 = vmatprep.subr.mxu0 0.0
      %793 = vmatpush2.msra.mxu0 0.0
      %794 = vmatprep.subr.mxu0 0.0
      %795 = vmatpush2.msra.mxu0 0.0
      %796 = vmatprep.subr.mxu0 0.0
      %797 = vmatpush2.msra.mxu0 0.0
      %798 = vmatprep.subr.mxu0 0.0
      %799 = vmatpush2.msra.mxu0 0.0
      %800 = vmatprep.subr.mxu0 0.0
      %801 = vmatpush2.msra.mxu0 0.0
      %802 = vmatprep.subr.mxu0 0.0
      %803 = vmatpush2.msra.mxu0 0.0
      %804 = vmatprep.subr.mxu0 0.0
      %805 = vmatpush2.msra.mxu0 0.0
      %806 = vmatprep.subr.mxu0 0.0
      %807 = vmatpush2.msra.mxu0 0.0
      %808 = vmatprep.subr.mxu0 0.0
      %809 = vmatpush2.msra.mxu0 0.0
      %810 = vmatprep.subr.mxu0 0.0
      %811 = vmatpush2.msra.mxu0 0.0
      %812 = vmatprep.subr.mxu0 0.0
      %813 = vmatpush2.msra.mxu0 0.0
      %814 = vmatprep.mubr.f32.mxu0 0.0
      %815 = vmatmul.mubr.f32.gmra.mxu0 %v739
      %v816 = vpop.f32.mrf.mxu0
      %v817 = vadd.f32 0.0, %v816
      %v818 = vpop.f32.mrf.mxu0
      %819 = vmatprep.mubr.f32.mxu0 0.0
      %820 = vmatmul.mubr.f32.gmra.mxu0 %v742
      %v821 = vpop.f32.mrf.mxu0
      %v822 = vadd.f32 0.0, %v821
      %v823 = vpop.f32.mrf.mxu0
      %824 = vmatprep.mubr.f32.mxu0 0.0
      %825 = vmatmul.mubr.f32.gmra.mxu0 %v745
      %v826 = vpop.f32.mrf.mxu0
      %v827 = vadd.f32 0.0, %v826
      %v828 = vpop.f32.mrf.mxu0
      %829 = vmatprep.mubr.f32.mxu0 0.0
      %830 = vmatmul.mubr.f32.gmra.mxu0 %v748
      %v831 = vpop.f32.mrf.mxu0
      %v832 = vadd.f32 0.0, %v831
      %v833 = vpop.f32.mrf.mxu0
      %834 = vdwg.mxu0
      %v836 = vlaneseq
      %v837 = vshrl.u32 %v836, 7
      %v838 = vsub.s32 0, %v837
      %v839 = vrot.slane %v737, %v838
      %841 = vmatprep.subr.mxu0 0.0
      %842 = vmatpush1.msra.mxu0 0.0
      %843 = vmatprep.subr.mxu0 0.0
      %844 = vmatpush1.msra.mxu0 0.0
      %845 = vmatprep.subr.mxu0 0.0
      %846 = vmatpush1.msra.mxu0 0.0
      %847 = vmatprep.subr.mxu0 0.0
      %848 = vmatpush1.msra.mxu0 0.0
      %849 = vmatprep.subr.mxu0 0.0
      %850 = vmatpush1.msra.mxu0 0.0
      %851 = vmatprep.subr.mxu0 0.0
      %852 = vmatpush1.msra.mxu0 0.0
      %853 = vmatprep.subr.mxu0 0.0
      %854 = vmatpush1.msra.mxu0 0.0
      %855 = vmatprep.subr.mxu0 0.0
      %856 = vmatpush1.msra.mxu0 0.0
      %857 = vmatprep.subr.mxu0 0.0
      %858 = vmatpush1.msra.mxu0 0.0
      %859 = vmatprep.subr.mxu0 0.0
      %860 = vmatpush1.msra.mxu0 0.0
      %861 = vmatprep.subr.mxu0 0.0
      %862 = vmatpush1.msra.mxu0 0.0
      %863 = vmatprep.subr.mxu0 0.0
      %864 = vmatpush1.msra.mxu0 0.0
      %865 = vmatprep.subr.mxu0 0.0
      %866 = vmatpush1.msra.mxu0 %v832
      %867 = vmatprep.subr.mxu0 0.0
      %868 = vmatpush1.msra.mxu0 %v827
      %869 = vmatprep.subr.mxu0 0.0
      %870 = vmatpush1.msra.mxu0 %v822
      %871 = vmatprep.subr.mxu0 0.0
      %872 = vmatpush1.msra.mxu0 %v817
      %873 = vmatprep.subr.mxu0 0.0
      %874 = vmatpush2.msra.mxu0 0.0
      %875 = vmatprep.subr.mxu0 0.0
      %876 = vmatpush2.msra.mxu0 0.0
      %877 = vmatprep.subr.mxu0 0.0
      %878 = vmatpush2.msra.mxu0 0.0
      %879 = vmatprep.subr.mxu0 0.0
      %880 = vmatpush2.msra.mxu0 0.0
      %881 = vmatprep.subr.mxu0 0.0
      %882 = vmatpush2.msra.mxu0 0.0
      %883 = vmatprep.subr.mxu0 0.0
      %884 = vmatpush2.msra.mxu0 0.0
      %885 = vmatprep.subr.mxu0 0.0
      %886 = vmatpush2.msra.mxu0 0.0
      %887 = vmatprep.subr.mxu0 0.0
      %888 = vmatpush2.msra.mxu0 0.0
      %889 = vmatprep.subr.mxu0 0.0
      %890 = vmatpush2.msra.mxu0 0.0
      %891 = vmatprep.subr.mxu0 0.0
      %892 = vmatpush2.msra.mxu0 0.0
      %893 = vmatprep.subr.mxu0 0.0
      %894 = vmatpush2.msra.mxu0 0.0
      %895 = vmatprep.subr.mxu0 0.0
      %896 = vmatpush2.msra.mxu0 0.0
      %897 = vmatprep.subr.mxu0 0.0
      %898 = vmatpush2.msra.mxu0 0.0
      %899 = vmatprep.subr.mxu0 0.0
      %900 = vmatpush2.msra.mxu0 0.0
      %901 = vmatprep.subr.mxu0 0.0
      %902 = vmatpush2.msra.mxu0 0.0
      %903 = vmatprep.subr.mxu0 0.0
      %904 = vmatpush2.msra.mxu0 0.0
      %905 = vmatprep.mubr.f32.mxu0 0.0
      %906 = vmatmul.mubr.f32.gmra.mxu0 %v633
      %v907 = vpop.f32.mrf.mxu0
      %v908 = vadd.f32 %v839, %v907
      %v909 = vpop.f32.mrf.mxu0
      %910 = vmatprep.mubr.f32.mxu0 0.0
      %911 = vmatmul.mubr.f32.gmra.mxu0 %v636
      %v912 = vpop.f32.mrf.mxu0
      %v913 = vadd.f32 %v839, %v912
      %v914 = vpop.f32.mrf.mxu0
      %915 = vmatprep.mubr.f32.mxu0 0.0
      %916 = vmatmul.mubr.f32.gmra.mxu0 %v639
      %v917 = vpop.f32.mrf.mxu0
      %v918 = vadd.f32 %v839, %v917
      %v919 = vpop.f32.mrf.mxu0
      %920 = vmatprep.mubr.f32.mxu0 0.0
      %921 = vmatmul.mubr.f32.gmra.mxu0 %v642
      %v922 = vpop.f32.mrf.mxu0
      %v923 = vadd.f32 %v839, %v922
      %v924 = vpop.f32.mrf.mxu0
      %925 = vdwg.mxu0
      %p926 = scmp.eq.s32.totalorder %s26, 0
      // Predicated region
      $region73: #{tabgnn_forward.1} parent=71 // pred_check
        %p927 = pneg %p926
      $region74: #{tabgnn_forward.1} parent=71 // pred_check_branch
        %929 = sbr.rel (%p927) target = $region76
      $region75: #{tabgnn_forward.1} parent=71 // pred_region
        %v930 = vld [vmem:[%s6] sm:$0xff]
        %v931 = vld [vmem:[%s6 + $0x8] sm:$0xff]
        %v932 = vld [vmem:[%s8] sm:$0x1]
        %v934 = vlaneseq
        %v935 = vshrl.u32 %v934, 7
        %v936 = vsub.s32 0, %v935
        %v937 = vrot.slane %v932, %v936
        %939 = vmatprep.subr.mxu0 0.0
        %940 = vmatpush1.msra.mxu0 0.0
        %941 = vmatprep.subr.mxu0 0.0
        %942 = vmatpush1.msra.mxu0 0.0
        %943 = vmatprep.subr.mxu0 0.0
        %944 = vmatpush1.msra.mxu0 0.0
        %945 = vmatprep.subr.mxu0 0.0
        %946 = vmatpush1.msra.mxu0 0.0
        %947 = vmatprep.subr.mxu0 0.0
        %948 = vmatpush1.msra.mxu0 0.0
        %949 = vmatprep.subr.mxu0 0.0
        %950 = vmatpush1.msra.mxu0 0.0
        %951 = vmatprep.subr.mxu0 0.0
        %952 = vmatpush1.msra.mxu0 0.0
        %953 = vmatprep.subr.mxu0 0.0
        %954 = vmatpush1.msra.mxu0 0.0
        %955 = vmatprep.subr.mxu0 0.0
        %956 = vmatpush1.msra.mxu0 0.0
        %957 = vmatprep.subr.mxu0 0.0
        %958 = vmatpush1.msra.mxu0 0.0
        %959 = vmatprep.subr.mxu0 0.0
        %960 = vmatpush1.msra.mxu0 0.0
        %961 = vmatprep.subr.mxu0 0.0
        %962 = vmatpush1.msra.mxu0 0.0
        %963 = vmatprep.subr.mxu0 0.0
        %964 = vmatpush1.msra.mxu0 0.0
        %965 = vmatprep.subr.mxu0 0.0
        %966 = vmatpush1.msra.mxu0 0.0
        %967 = vmatprep.subr.mxu0 0.0
        %968 = vmatpush1.msra.mxu0 %v931
        %969 = vmatprep.subr.mxu0 0.0
        %970 = vmatpush1.msra.mxu0 %v930
        %971 = vmatprep.subr.mxu0 0.0
        %972 = vmatpush2.msra.mxu0 0.0
        %973 = vmatprep.subr.mxu0 0.0
        %974 = vmatpush2.msra.mxu0 0.0
        %975 = vmatprep.subr.mxu0 0.0
        %976 = vmatpush2.msra.mxu0 0.0
        %977 = vmatprep.subr.mxu0 0.0
        %978 = vmatpush2.msra.mxu0 0.0
        %979 = vmatprep.subr.mxu0 0.0
        %980 = vmatpush2.msra.mxu0 0.0
        %981 = vmatprep.subr.mxu0 0.0
        %982 = vmatpush2.msra.mxu0 0.0
        %983 = vmatprep.subr.mxu0 0.0
        %984 = vmatpush2.msra.mxu0 0.0
        %985 = vmatprep.subr.mxu0 0.0
        %986 = vmatpush2.msra.mxu0 0.0
        %987 = vmatprep.subr.mxu0 0.0
        %988 = vmatpush2.msra.mxu0 0.0
        %989 = vmatprep.subr.mxu0 0.0
        %990 = vmatpush2.msra.mxu0 0.0
        %991 = vmatprep.subr.mxu0 0.0
        %992 = vmatpush2.msra.mxu0 0.0
        %993 = vmatprep.subr.mxu0 0.0
        %994 = vmatpush2.msra.mxu0 0.0
        %995 = vmatprep.subr.mxu0 0.0
        %996 = vmatpush2.msra.mxu0 0.0
        %997 = vmatprep.subr.mxu0 0.0
        %998 = vmatpush2.msra.mxu0 0.0
        %999 = vmatprep.subr.mxu0 0.0
        %1000 = vmatpush2.msra.mxu0 0.0
        %1001 = vmatprep.subr.mxu0 0.0
        %1002 = vmatpush2.msra.mxu0 0.0
        %1003 = vmatprep.mubr.f32.mxu0 0.0
        %1004 = vmatmul.mubr.f32.gmra.mxu0 %v529
        %v1005 = vpop.f32.mrf.mxu0
        %v1006 = vadd.f32 %v937, %v1005
        %v1007 = vpop.f32.mrf.mxu0
        %1008 = vmatprep.mubr.f32.mxu0 0.0
        %1009 = vmatmul.mubr.f32.gmra.mxu0 %v532
        %v1010 = vpop.f32.mrf.mxu0
        %v1011 = vadd.f32 %v937, %v1010
        %v1012 = vpop.f32.mrf.mxu0
        %1013 = vmatprep.mubr.f32.mxu0 0.0
        %1014 = vmatmul.mubr.f32.gmra.mxu0 %v535
        %v1015 = vpop.f32.mrf.mxu0
        %v1016 = vadd.f32 %v937, %v1015
        %v1017 = vpop.f32.mrf.mxu0
        %1018 = vmatprep.mubr.f32.mxu0 0.0
        %1019 = vmatmul.mubr.f32.gmra.mxu0 %v538
        %v1020 = vpop.f32.mrf.mxu0
        %v1021 = vadd.f32 %v937, %v1020
        %v1022 = vpop.f32.mrf.mxu0
        %1023 = vdwg.mxu0
        %1024 = vst.msk [vmem:[#allocation2] sm:$0xff] %vm631, %v1006
        %1025 = vst.msk [vmem:[#allocation2 + $0x8] sm:$0xff] %vm631, %v1011
        %1026 = vst.msk [vmem:[#allocation2 + $0x10] sm:$0xff] %vm631, %v1016
        %1027 = vst.msk [vmem:[#allocation2 + $0x18] sm:$0xff] %vm631, %v1021
      $region76: #{tabgnn_forward.1} parent=71 // pred_fallthru
        _
      %v1028 = vld [vmem:[#allocation2] sm:$0xff]
      %v1029 = vld [vmem:[#allocation2 + $0x8] sm:$0xff]
      %v1030 = vld [vmem:[#allocation2 + $0x10] sm:$0xff]
      %v1031 = vld [vmem:[#allocation2 + $0x18] sm:$0xff]
      %v1032 = vld [vmem:[%s515] sm:$0xff]
      %v1033 = vld [vmem:[%s515 + $0x8] sm:$0xff]
      %v1035 = vsel %vm527, %v908, 0
      %v1038 = vsel %vm527, %v913, 0
      %v1041 = vsel %vm527, %v918, 0
      %v1044 = vsel %vm527, %v923, 0
      %1046 = vmatprep.subr.mxu0 0.0
      %1047 = vmatpush1.msra.mxu0 0.0
      %1048 = vmatprep.subr.mxu0 0.0
      %1049 = vmatpush1.msra.mxu0 0.0
      %1050 = vmatprep.subr.mxu0 0.0
      %1051 = vmatpush1.msra.mxu0 0.0
      %1052 = vmatprep.subr.mxu0 0.0
      %1053 = vmatpush1.msra.mxu0 0.0
      %1054 = vmatprep.subr.mxu0 0.0
      %1055 = vmatpush1.msra.mxu0 0.0
      %1056 = vmatprep.subr.mxu0 0.0
      %1057 = vmatpush1.msra.mxu0 0.0
      %1058 = vmatprep.subr.mxu0 0.0
      %1059 = vmatpush1.msra.mxu0 0.0
      %1060 = vmatprep.subr.mxu0 0.0
      %1061 = vmatpush1.msra.mxu0 0.0
      %1062 = vmatprep.subr.mxu0 0.0
      %1063 = vmatpush1.msra.mxu0 0.0
      %1064 = vmatprep.subr.mxu0 0.0
      %1065 = vmatpush1.msra.mxu0 0.0
      %1066 = vmatprep.subr.mxu0 0.0
      %1067 = vmatpush1.msra.mxu0 0.0
      %1068 = vmatprep.subr.mxu0 0.0
      %1069 = vmatpush1.msra.mxu0 0.0
      %1070 = vmatprep.subr.mxu0 0.0
      %1071 = vmatpush1.msra.mxu0 0.0
      %1072 = vmatprep.subr.mxu0 0.0
      %1073 = vmatpush1.msra.mxu0 0.0
      %1074 = vmatprep.subr.mxu0 0.0
      %1075 = vmatpush1.msra.mxu0 %v1033
      %1076 = vmatprep.subr.mxu0 0.0
      %1077 = vmatpush1.msra.mxu0 %v1032
      %1078 = vmatprep.subr.mxu0 0.0
      %1079 = vmatpush2.msra.mxu0 0.0
      %1080 = vmatprep.subr.mxu0 0.0
      %1081 = vmatpush2.msra.mxu0 0.0
      %1082 = vmatprep.subr.mxu0 0.0
      %1083 = vmatpush2.msra.mxu0 0.0
      %1084 = vmatprep.subr.mxu0 0.0
      %1085 = vmatpush2.msra.mxu0 0.0
      %1086 = vmatprep.subr.mxu0 0.0
      %1087 = vmatpush2.msra.mxu0 0.0
      %1088 = vmatprep.subr.mxu0 0.0
      %1089 = vmatpush2.msra.mxu0 0.0
      %1090 = vmatprep.subr.mxu0 0.0
      %1091 = vmatpush2.msra.mxu0 0.0
      %1092 = vmatprep.subr.mxu0 0.0
      %1093 = vmatpush2.msra.mxu0 0.0
      %1094 = vmatprep.subr.mxu0 0.0
      %1095 = vmatpush2.msra.mxu0 0.0
      %1096 = vmatprep.subr.mxu0 0.0
      %1097 = vmatpush2.msra.mxu0 0.0
      %1098 = vmatprep.subr.mxu0 0.0
      %1099 = vmatpush2.msra.mxu0 0.0
      %1100 = vmatprep.subr.mxu0 0.0
      %1101 = vmatpush2.msra.mxu0 0.0
      %1102 = vmatprep.subr.mxu0 0.0
      %1103 = vmatpush2.msra.mxu0 0.0
      %1104 = vmatprep.subr.mxu0 0.0
      %1105 = vmatpush2.msra.mxu0 0.0
      %1106 = vmatprep.subr.mxu0 0.0
      %1107 = vmatpush2.msra.mxu0 0.0
      %1108 = vmatprep.subr.mxu0 0.0
      %1109 = vmatpush2.msra.mxu0 0.0
      %1110 = vmatprep.mubr.f32.mxu0 0.0
      %1111 = vmatmul.mubr.f32.gmra.mxu0 %v1035
      %v1112 = vpop.f32.mrf.mxu0
      %v1113 = vadd.f32 0.0, %v1112
      %v1114 = vpop.f32.mrf.mxu0
      %1115 = vmatprep.mubr.f32.mxu0 0.0
      %1116 = vmatmul.mubr.f32.gmra.mxu0 %v1038
      %v1117 = vpop.f32.mrf.mxu0
      %v1118 = vadd.f32 0.0, %v1117
      %v1119 = vpop.f32.mrf.mxu0
      %1120 = vmatprep.mubr.f32.mxu0 0.0
      %1121 = vmatmul.mubr.f32.gmra.mxu0 %v1041
      %v1122 = vpop.f32.mrf.mxu0
      %v1123 = vadd.f32 0.0, %v1122
      %v1124 = vpop.f32.mrf.mxu0
      %1125 = vmatprep.mubr.f32.mxu0 0.0
      %1126 = vmatmul.mubr.f32.gmra.mxu0 %v1044
      %v1127 = vpop.f32.mrf.mxu0
      %v1128 = vadd.f32 0.0, %v1127
      %v1129 = vpop.f32.mrf.mxu0
      %1130 = vdwg.mxu0
      %v1131 = vadd.f32 %v1028, %v1113
      %v1132 = vadd.f32 %v1029, %v1118
      %v1133 = vadd.f32 %v1030, %v1123
      %v1134 = vadd.f32 %v1031, %v1128
      %1135 = vst.msk [vmem:[#allocation2] sm:$0xff] %vm631, %v1131
      %1136 = vst.msk [vmem:[#allocation2 + $0x8] sm:$0xff] %vm631, %v1132
      %1137 = vst.msk [vmem:[#allocation2 + $0x10] sm:$0xff] %vm631, %v1133
      %1138 = vst.msk [vmem:[#allocation2 + $0x18] sm:$0xff] %vm631, %v1134
      %p1139 = scmp.eq.s32.totalorder %s26, 1
      // Predicated region
      $region77: #{tabgnn_forward.1} parent=71 // pred_check
        %p1140 = pneg %p1139
      $region78: #{tabgnn_forward.1} parent=71 // pred_check_branch
        %1142 = sbr.rel (%p1140) target = $region80
      $region79: #{tabgnn_forward.1} parent=71 // pred_region
        %v1143 = vld [vmem:[#allocation2] sm:$0xff]
        %v1144 = vld [vmem:[#allocation2 + $0x8] sm:$0xff]
        %v1145 = vld [vmem:[#allocation2 + $0x10] sm:$0xff]
        %v1146 = vld [vmem:[#allocation2 + $0x18] sm:$0xff]
        %v1147 = vmax.f32 %v1143, 0.0
        %v1148 = vmax.f32 %v1144, 0.0
        %v1149 = vmax.f32 %v1145, 0.0
        %v1150 = vmax.f32 %v1146, 0.0
        %v1151 = vld [vmem:[%s9] sm:$0xff]
        %v1152 = vld [vmem:[%s9 + $0x8] sm:$0xff]
        %v1153 = vld [vmem:[%s9 + $0x10] sm:$0xff]
        %v1154 = vld [vmem:[%s9 + $0x18] sm:$0xff]
        %v1155 = vld [vmem:[%s10] sm:$0x1]
        %v1157 = vlaneseq
        %v1158 = vshrl.u32 %v1157, 7
        %v1159 = vsub.s32 0, %v1158
        %v1160 = vrot.slane %v1155, %v1159
        %v1163 = vsel %vm631, %v1147, 0
        %v1166 = vsel %vm631, %v1148, 0
        %v1169 = vsel %vm631, %v1149, 0
        %v1172 = vsel %vm631, %v1150, 0
        %1174 = vmatprep.subr.mxu0 0.0
        %1175 = vmatpush1.msra.mxu0 0.0
        %1176 = vmatprep.subr.mxu0 0.0
        %1177 = vmatpush1.msra.mxu0 0.0
        %1178 = vmatprep.subr.mxu0 0.0
        %1179 = vmatpush1.msra.mxu0 0.0
        %1180 = vmatprep.subr.mxu0 0.0
        %1181 = vmatpush1.msra.mxu0 0.0
        %1182 = vmatprep.subr.mxu0 0.0
        %1183 = vmatpush1.msra.mxu0 0.0
        %1184 = vmatprep.subr.mxu0 0.0
        %1185 = vmatpush1.msra.mxu0 0.0
        %1186 = vmatprep.subr.mxu0 0.0
        %1187 = vmatpush1.msra.mxu0 0.0
        %1188 = vmatprep.subr.mxu0 0.0
        %1189 = vmatpush1.msra.mxu0 0.0
        %1190 = vmatprep.subr.mxu0 0.0
        %1191 = vmatpush1.msra.mxu0 0.0
        %1192 = vmatprep.subr.mxu0 0.0
        %1193 = vmatpush1.msra.mxu0 0.0
        %1194 = vmatprep.subr.mxu0 0.0
        %1195 = vmatpush1.msra.mxu0 0.0
        %1196 = vmatprep.subr.mxu0 0.0
        %1197 = vmatpush1.msra.mxu0 0.0
        %1198 = vmatprep.subr.mxu0 0.0
        %1199 = vmatpush1.msra.mxu0 %v1154
        %1200 = vmatprep.subr.mxu0 0.0
        %1201 = vmatpush1.msra.mxu0 %v1153
        %1202 = vmatprep.subr.mxu0 0.0
        %1203 = vmatpush1.msra.mxu0 %v1152
        %1204 = vmatprep.subr.mxu0 0.0
        %1205 = vmatpush1.msra.mxu0 %v1151
        %1206 = vmatprep.subr.mxu0 0.0
        %1207 = vmatpush2.msra.mxu0 0.0
        %1208 = vmatprep.subr.mxu0 0.0
        %1209 = vmatpush2.msra.mxu0 0.0
        %1210 = vmatprep.subr.mxu0 0.0
        %1211 = vmatpush2.msra.mxu0 0.0
        %1212 = vmatprep.subr.mxu0 0.0
        %1213 = vmatpush2.msra.mxu0 0.0
        %1214 = vmatprep.subr.mxu0 0.0
        %1215 = vmatpush2.msra.mxu0 0.0
        %1216 = vmatprep.subr.mxu0 0.0
        %1217 = vmatpush2.msra.mxu0 0.0
        %1218 = vmatprep.subr.mxu0 0.0
        %1219 = vmatpush2.msra.mxu0 0.0
        %1220 = vmatprep.subr.mxu0 0.0
        %1221 = vmatpush2.msra.mxu0 0.0
        %1222 = vmatprep.subr.mxu0 0.0
        %1223 = vmatpush2.msra.mxu0 0.0
        %1224 = vmatprep.subr.mxu0 0.0
        %1225 = vmatpush2.msra.mxu0 0.0
        %1226 = vmatprep.subr.mxu0 0.0
        %1227 = vmatpush2.msra.mxu0 0.0
        %1228 = vmatprep.subr.mxu0 0.0
        %1229 = vmatpush2.msra.mxu0 0.0
        %1230 = vmatprep.subr.mxu0 0.0
        %1231 = vmatpush2.msra.mxu0 0.0
        %1232 = vmatprep.subr.mxu0 0.0
        %1233 = vmatpush2.msra.mxu0 0.0
        %1234 = vmatprep.subr.mxu0 0.0
        %1235 = vmatpush2.msra.mxu0 0.0
        %1236 = vmatprep.subr.mxu0 0.0
        %1237 = vmatpush2.msra.mxu0 0.0
        %1238 = vmatprep.mubr.f32.mxu0 0.0
        %1239 = vmatmul.mubr.f32.gmra.mxu0 %v1163
        %v1240 = vpop.f32.mrf.mxu0
        %v1241 = vadd.f32 %v1160, %v1240
        %v1242 = vpop.f32.mrf.mxu0
        %1243 = vmatprep.mubr.f32.mxu0 0.0
        %1244 = vmatmul.mubr.f32.gmra.mxu0 %v1166
        %v1245 = vpop.f32.mrf.mxu0
        %v1246 = vadd.f32 %v1160, %v1245
        %v1247 = vpop.f32.mrf.mxu0
        %1248 = vmatprep.mubr.f32.mxu0 0.0
        %1249 = vmatmul.mubr.f32.gmra.mxu0 %v1169
        %v1250 = vpop.f32.mrf.mxu0
        %v1251 = vadd.f32 %v1160, %v1250
        %v1252 = vpop.f32.mrf.mxu0
        %1253 = vmatprep.mubr.f32.mxu0 0.0
        %1254 = vmatmul.mubr.f32.gmra.mxu0 %v1172
        %v1255 = vpop.f32.mrf.mxu0
        %v1256 = vadd.f32 %v1160, %v1255
        %v1257 = vpop.f32.mrf.mxu0
        %1258 = vdwg.mxu0
        %v1259 = vmax.f32 %v1241, 0.0
        %v1260 = vmax.f32 %v1246, 0.0
        %v1261 = vmax.f32 %v1251, 0.0
        %v1262 = vmax.f32 %v1256, 0.0
        %v1263 = vld [vmem:[%s11] sm:$0x1]
        %v1264 = vld [vmem:[#allocation3] sm:$0x1]
        %v1266 = vlaneseq
        %v1267 = vshrl.u32 %v1266, 7
        %v1268 = vsub.s32 0, %v1267
        %v1269 = vrot.slane %v1263, %v1268
        %v1271 = vmul.f32 %v1259, %v1269
        %v1272 = vmul.f32 %v1260, %v1269
        %v1273 = vmul.f32 %v1261, %v1269
        %v1274 = vmul.f32 %v1262, %v1269
        %v1275 = vsel %vm527, %v1271, 0.0
        %1276 = vadd.xlane.f32.xlu0 %v1275
        %v1277 = vpop.xlane.xlu0 %1276
        %v1278 = vsel %vm527, %v1272, 0.0
        %1279 = vadd.xlane.f32.xlu0 %v1278
        %v1280 = vpop.xlane.xlu0 %1279
        %v1281 = vsel %vm527, %v1273, 0.0
        %1282 = vadd.xlane.f32.xlu0 %v1281
        %v1283 = vpop.xlane.xlu0 %1282
        %v1284 = vsel %vm527, %v1274, 0.0
        %1285 = vadd.xlane.f32.xlu0 %v1284
        %v1286 = vpop.xlane.xlu0 %1285
        %v1288 = vlaneseq
        %v1289 = vshrl.u32 %v1288, 7
        %v1290 = vsub.s32 0, %v1289
        %v1291 = vrot.slane %v1264, %v1290
        %v1293 = vadd.f32 %v1277, %v1291
        %v1294 = vadd.f32 %v1280, %v1291
        %v1295 = vadd.f32 %v1283, %v1291
        %v1296 = vadd.f32 %v1286, %v1291
        %vm1297 = vcmask 7168
        %1298 = vst.msk [vmem:[%s13] sm:$0xff] %vm1297, %v1293
        %1299 = vst.msk [vmem:[%s13 + $0x8] sm:$0xff] %vm1297, %v1294
        %1300 = vst.msk [vmem:[%s13 + $0x10] sm:$0xff] %vm1297, %v1295
        %1301 = vst.msk [vmem:[%s13 + $0x18] sm:$0xff] %vm1297, %v1296
      $region80: #{tabgnn_forward.1} parent=71 // pred_fallthru
        _
      // Predicated region
      $region81: #{tabgnn_forward.1} parent=71 // pred_check
        %p1302 = pneg %p342
      $region82: #{tabgnn_forward.1} parent=71 // pred_check_branch
        %1304 = sbr.rel (%p1302) target = $region84
      $region83: #{tabgnn_forward.1} parent=71 // pred_region
        _
      $region84: #{tabgnn_forward.1} parent=71 // pred_fallthru
        _
      // Predicated region
      $region85: #{tabgnn_forward.1} parent=71 // pred_check
        %p1305 = pneg %p342
      $region86: #{tabgnn_forward.1} parent=71 // pred_check_branch
        %1307 = sbr.rel (%p1305) target = $region88
      $region87: #{tabgnn_forward.1} parent=71 // pred_region
        _
      $region88: #{tabgnn_forward.1} parent=71 // pred_fallthru
        _
    $region72: #{tabgnn_forward.1} parent=5 // pred_fallthru
      _
    %p1308 = scmp.le.s32.totalorder 2, %s21
    // Predicated region
    $region89: #{tabgnn_forward.1} parent=5 // pred_check
      %p1309 = pneg %p1308
    $region90: #{tabgnn_forward.1} parent=5 // pred_check_branch
      %1311 = sbr.rel (%p1309) target = $region92
    $region91: #{tabgnn_forward.1} parent=5 // pred_region
      %s1312 = ssub.s32 %s21, 2
    $region92: #{tabgnn_forward.1} parent=5 // pred_fallthru
      _
  $region6: #{tabgnn_forward.1} parent=0 // loop_footer
    %s25 = sadd.s32 1, %s21
  $region7: #{tabgnn_forward.1} parent=0 // loop_footer_branch
    %20 = sbr.rel target = $region3
  $region8: #{tabgnn_forward.1} parent=0 // loop_exit
    _

</llo_original>
